<compile_context>
chip_gen: v6e
topology: v6e:2x2x1
jax: 0.10.0
libtpu: 0.0.40
codegen_flags: <defaults>
</compile_context>

<pallas_src>
import jax
import jax.numpy as jnp
from jax import lax
from jax.experimental import pallas as pl
from jax.experimental.pallas import tpu as pltpu

_INV_SQRT2 = 0.7071067811865476
_VMEM_LIMIT = 32 * 1024 * 1024  # explicit; safe on v5e/v6e/v7x


def _round_up(x, m):
    return (x + m - 1) // m * m


def _erf_poly(x):
    # Abramowitz & Stegun 7.1.26 rational approximation (|err| < 1.5e-7).
    # exp + reciprocal both land on the EUP slot.
    a1, a2, a3, a4, a5 = 0.254829592, -0.284496736, 1.421413741, -1.453152027, 1.061405429
    p = 0.3275911
    ax = jnp.abs(x)
    t = pl.reciprocal(1.0 + p * ax, approx=True)
    poly = t * (a1 + t * (a2 + t * (a3 + t * a5 + t * a4)))  # keep Horner order
    poly = t * (a1 + t * (a2 + t * (a3 + t * (a4 + t * a5))))
    y = 1.0 - poly * jnp.exp(-ax * ax)
    return jnp.where(x >= 0, y, -y)


def _gelu_exact(x):
    # Matches torch.nn.GELU() default (erf form), computed in f32.
    return 0.5 * x * (1.0 + _erf_poly(x * _INV_SQRT2))


def _conv_gelu_kernel(p_ref, w_ref, b_ref, o_ref):
    """(tm, kk)bf16 @ (kk, cout)bf16 -> f32 MXU accumulate, bias + exact GELU in f32,
    then a lane-dense folded bf16 store: `fold` M-rows are packed into the lane dim so
    the output block is (tm//fold, fold*cout) == (tm//fold, 128) — avoids masked
    vst.msk partial stores (cout=32 < 128 lanes)."""
    cout = w_ref.shape[1]
    fold = o_ref.shape[-1] // cout
    q = o_ref.shape[0]
    acc = jnp.dot(p_ref[...], w_ref[...], preferred_element_type=jnp.float32)
    act = _gelu_exact(acc + b_ref[...])                      # (tm, cout) f32
    if fold == 1:
        o_ref[...] = act.astype(o_ref.dtype)
    else:
        # Aligned sublane slices + lane-dim concat (q is a multiple of 16).
        folded = jnp.concatenate(
            [act[f * q:(f + 1) * q, :] for f in range(fold)], axis=-1)
        o_ref[...] = folded.astype(o_ref.dtype)


def _conv_gelu_pool_kernel(p_ref, w_ref, b_ref, o_ref):
    """Batch-tiled conv3 + bias + GELU + global average pool, all in VMEM.
    p_ref: (TB, S, KK) bf16; o_ref: (1, TB, cout) f32."""
    tb, s, kk = p_ref.shape
    cout = w_ref.shape[1]
    if tb == 1:
        p = p_ref[0]                                          # (S, KK)
    else:
        p = p_ref[...].reshape(tb * s, kk)                    # (TB*S, KK)
    acc = jnp.dot(p, w_ref[...], preferred_element_type=jnp.float32)
    act = _gelu_exact(acc + b_ref[...])                       # (TB*S, cout) f32
    if tb == 1:
        o_ref[0] = jnp.mean(act, axis=0, keepdims=True)
    else:
        # Per-sample mean via a tiny block-diagonal "pooling" matmul (avoids a
        # sublane-splitting reshape of the activation).
        r = lax.broadcasted_iota(jnp.int32, (tb, tb * s), 1)
        g = lax.broadcasted_iota(jnp.int32, (tb, tb * s), 0)
        pool = jnp.where(r // s == g, 1.0 / s, 0.0).astype(jnp.float32)
        o_ref[0] = jnp.dot(pool, act, preferred_element_type=jnp.float32)


def _extract_patches_nhwc(x, k, stride, pad):
    """im2col glue: (N,H,W,C) -> (N*Ho*Wo, k*k*C), column order (kh, kw, Cin).

    XLA fuses pad/slice/stack/reshape/convert into one producer fusion feeding the
    pallas_call, so the patch matrix is written to HBM once (in bf16 after the cast)."""
    n, h, w, c = x.shape
    ho = (h + 2 * pad - k) // stride + 1
    wo = (w + 2 * pad - k) // stride + 1
    xp = jnp.pad(x, ((0, 0), (pad, pad), (pad, pad), (0, 0)))
    cols = []
    for di in range(k):
        for dj in range(k):
            cols.append(
                xp[:, di:di + (ho - 1) * stride + 1:stride,
                      dj:dj + (wo - 1) * stride + 1:stride, :])
    patches = jnp.stack(cols, axis=3)  # (N, Ho, Wo, k*k, C)
    return patches.reshape(n * ho * wo, k * k * c), (n, ho, wo)


def _weight_2d(w_oihw, k, cin, cout):
    # (Cout, Cin, kh, kw) -> (kh, kw, Cin, Cout) -> (k*k*Cin, Cout), matching patch order.
    return jnp.transpose(w_oihw, (2, 3, 1, 0)).reshape(k * k * cin, cout)


def _conv_gelu(x_nhwc, w_oihw, b, k, stride, pad, tm_max=1024):
    """Strided conv + exact GELU. M-tiled, pipelined, bf16 in / bf16 out, f32 accumulate,
    lane-dense folded stores, >=2 tiles where possible (v7x megacore)."""
    patches, (n, ho, wo) = _extract_patches_nhwc(x_nhwc, k, stride, pad)
    m, kk = patches.shape
    cout, cin = w_oihw.shape[0], w_oihw.shape[1]

    fold = 128 // cout if (cout < 128 and 128 % cout == 0) else 1
    unit = 16 * fold                                  # bf16 sublane packing x lane fold
    if m <= unit:
        tm = unit
    else:
        ntiles = max(2, pl.cdiv(m, tm_max))           # >=2 tiles so both v7x TCs work
        tm = min(_round_up(pl.cdiv(m, ntiles), unit), _round_up(tm_max, unit))
    m_pad = _round_up(m, tm)
    num_tiles = m_pad // tm
    q = tm // fold

    patches = patches.astype(jnp.bfloat16)
    if m_pad != m:
        # Zero rows -> GELU(bias) in the padded region (finite), discarded below.
        patches = jnp.pad(patches, ((0, m_pad - m), (0, 0)))
    w2d = _weight_2d(w_oihw, k, cin, cout).astype(jnp.bfloat16)
    b2d = b.reshape(1, cout).astype(jnp.float32)

    cost = pl.CostEstimate(
        flops=2 * m_pad * kk * cout,
        transcendentals=2 * m_pad * cout,
        bytes_accessed=m_pad * kk * 2 + kk * cout * 2 + m_pad * cout * 2,
    )

    out = pl.pallas_call(
        _conv_gelu_kernel,
        out_shape=jax.ShapeDtypeStruct((m_pad // fold, fold * cout), jnp.bfloat16),
        grid=(num_tiles,),
        in_specs=[
            pl.BlockSpec((tm, kk), lambda i: (i, 0)),
            pl.BlockSpec((kk, cout), lambda i: (0, 0)),   # weight resident across tiles
            pl.BlockSpec((1, cout), lambda i: (0, 0)),
        ],
        out_specs=pl.BlockSpec((q, fold * cout), lambda i: (i, 0)),
        compiler_params=pltpu.CompilerParams(
            dimension_semantics=("parallel",),
            vmem_limit_bytes=_VMEM_LIMIT,
        ),
        cost_estimate=cost,
    )(patches, w2d, b2d)

    # Undo the per-tile row->lane fold: within tile t, lane group f holds original
    # rows [t*tm + f*q, t*tm + (f+1)*q). This reshape/transpose fuses into the next
    # layer's patch-building fusion.
    if fold > 1:
        out = (out.reshape(num_tiles, q, fold, cout)
                  .transpose(0, 2, 1, 3)
                  .reshape(m_pad, cout))
    return out[:m].reshape(n, ho, wo, cout)


def _conv_gelu_pool(x_nhwc, w_oihw, b, k, stride, pad, tb_budget_bytes=4 << 20):
    """Final conv + GELU fused with AdaptiveAvgPool2d(1). Batch-tiled: TB samples per
    grid step (one MXU matmul + per-sample mean), >=2 grid steps when N >= 2."""
    patches, (n, ho, wo) = _extract_patches_nhwc(x_nhwc, k, stride, pad)
    m, kk = patches.shape
    s = ho * wo
    cout, cin = w_oihw.shape[0], w_oihw.shape[1]

    per_sample_bytes = s * kk * 2
    tb = max(1, min(n, tb_budget_bytes // max(per_sample_bytes, 1)))
    if n >= 2:
        tb = max(1, min(tb, pl.cdiv(n, 2)))   # keep >=2 grid steps for v7x's two TCs
    nb = pl.cdiv(n, tb)
    n_pad = nb * tb

    p3 = patches.astype(jnp.bfloat16).reshape(n, s, kk)
    if n_pad != n:
        p3 = jnp.pad(p3, ((0, n_pad - n), (0, 0), (0, 0)))
    w2d = _weight_2d(w_oihw, k, cin, cout).astype(jnp.bfloat16)
    b2d = b.reshape(1, cout).astype(jnp.float32)

    cost = pl.CostEstimate(
        flops=2 * n_pad * s * kk * cout + 2 * n_pad * tb * s * cout,
        transcendentals=2 * n_pad * s * cout,
        bytes_accessed=n_pad * s * kk * 2 + kk * cout * 2 + n_pad * cout * 4,
    )

    out = pl.pallas_call(
        _conv_gelu_pool_kernel,
        out_shape=jax.ShapeDtypeStruct((nb, tb, cout), jnp.float32),
        grid=(nb,),
        in_specs=[
            pl.BlockSpec((tb, s, kk), lambda i: (i, 0, 0)),
            pl.BlockSpec((kk, cout), lambda i: (0, 0)),
            pl.BlockSpec((1, cout), lambda i: (0, 0)),
        ],
        out_specs=pl.BlockSpec((1, tb, cout), lambda i: (i, 0, 0)),
        compiler_params=pltpu.CompilerParams(
            dimension_semantics=("parallel",),
            vmem_limit_bytes=_VMEM_LIMIT,
        ),
        cost_estimate=cost,
    )(p3, w2d, b2d)
    return out.reshape(n_pad, cout)[:n]


def init_params(key, in_ch=3, nf=32):
    ks = jax.random.split(key, 6)

    def conv_w(k, cout, cin, ksz):
        fan_in = cin * ksz * ksz
        return jax.random.normal(k, (cout, cin, ksz, ksz), jnp.float32) / jnp.sqrt(fan_in)

    return {
        "w1": conv_w(ks[0], nf, in_ch, 7),
        "b1": 0.01 * jax.random.normal(ks[1], (nf,), jnp.float32),
        "w2": conv_w(ks[2], nf, nf, 3),
        "b2": 0.01 * jax.random.normal(ks[3], (nf,), jnp.float32),
        "w3": conv_w(ks[4], nf, nf, 3),
        "b3": 0.01 * jax.random.normal(ks[5], (nf,), jnp.float32),
    }


@jax.jit
def condition_net(params, x_nchw):
    x = jnp.transpose(x_nchw, (0, 2, 3, 1))                            # NCHW -> NHWC
    out = _conv_gelu(x, params["w1"], params["b1"], 7, 2, 1)           # bf16 activations
    out = _conv_gelu(out, params["w2"], params["b2"], 3, 2, 1)
    cond = _conv_gelu_pool(out, params["w3"], params["b3"], 3, 2, 1)   # (N, nf) f32
    return cond[:, :, None, None]                                      # (N, nf, 1, 1)


def _reference(params, x_nchw, quantize_bf16):
    # Pure-JAX reference. With quantize_bf16=True it mirrors the kernel's operand
    # quantization (bf16 inputs/weights, f32 accumulation) for a tight structural check.
    x = jnp.transpose(x_nchw, (0, 2, 3, 1))

    def conv(x, w, b, s, p):
        w_hwio = jnp.transpose(w, (2, 3, 1, 0))
        if quantize_bf16:
            x = x.astype(jnp.bfloat16)
            w_hwio = w_hwio.astype(jnp.bfloat16)
        y = lax.conv_general_dilated(
            x, w_hwio, (s, s), [(p, p), (p, p)],
            dimension_numbers=("NHWC", "HWIO", "NHWC"),
            preferred_element_type=jnp.float32,
            precision=lax.Precision.HIGHEST)
        return jax.nn.gelu(y + b, approximate=False)

    out = conv(x, params["w1"], params["b1"], 2, 1)
    out = conv(out, params["w2"], params["b2"], 2, 1)
    out = conv(out, params["w3"], params["b3"], 2, 1)
    cond = jnp.mean(out, axis=(1, 2))
    return cond[:, :, None, None]


if __name__ == "__main__":
    key = jax.random.PRNGKey(0)
    kp, kx = jax.random.split(key)
    params = init_params(kp, in_ch=3, nf=32)
    x = jax.random.normal(kx, (2, 3, 16, 16), jnp.float32)  # NCHW, like the PyTorch module

    y = jax.block_until_ready(condition_net(params, x))
    assert y.shape == (2, 32, 1, 1), y.shape
    assert jnp.all(jnp.isfinite(y)), "non-finite output"

    # Tight check vs a reference with matching bf16 operand quantization
    # (only erf-poly / approx-reciprocal / accumulation-order differences remain).
    ref_q = _reference(params, x, quantize_bf16=True)
    assert jnp.allclose(y, ref_q, rtol=1e-2, atol=1e-2), \
        f"max abs err vs bf16 ref {float(jnp.max(jnp.abs(y - ref_q)))}"

    # Looser check vs the full-f32 reference (documents bf16 quantization impact).
    ref_f = _reference(params, x, quantize_bf16=False)
    assert jnp.allclose(y, ref_f, rtol=3e-2, atol=3e-2), \
        f"max abs err vs f32 ref {float(jnp.max(jnp.abs(y - ref_f)))}"

    print("KERNEL_OK")
</pallas_src>

<mosaic_0001>
module attributes {stable_mosaic.version = 11 : i64} {
  func.func @_conv_gelu_kernel(%arg0: i32, %arg1: memref<64x147xbf16, #tpu.memory_space<vmem>>, %arg2: memref<147x32xbf16, #tpu.memory_space<vmem>>, %arg3: memref<1x32xf32, #tpu.memory_space<vmem>>, %arg4: memref<16x128xbf16, #tpu.memory_space<vmem>>) attributes {dimension_semantics = [#tpu.dimension_semantics<parallel>], iteration_bounds = array<i64: 2>, scalar_prefetch = 0 : i64, scratch_operands = 0 : i64, tpu.core_type = #tpu.core_type<tc>, window_params = [{transform_indices = @transform_0, window_bounds = array<i64: 64, 147>}, {pipeline_mode = #tpu.pipeline_mode<synchronous>, transform_indices = @transform_1, window_bounds = array<i64: 147, 32>}, {pipeline_mode = #tpu.pipeline_mode<synchronous>, transform_indices = @transform_2, window_bounds = array<i64: 1, 32>}, {transform_indices = @transform_3, window_bounds = array<i64: 16, 128>}]} {
    %c0 = arith.constant 0 : index
    %c0_0 = arith.constant 0 : index
    %0 = vector.load %arg1[%c0, %c0_0] : memref<64x147xbf16, #tpu.memory_space<vmem>>, vector<64x147xbf16>
    %c0_1 = arith.constant 0 : index
    %c0_2 = arith.constant 0 : index
    %1 = vector.load %arg2[%c0_1, %c0_2] : memref<147x32xbf16, #tpu.memory_space<vmem>>, vector<147x32xbf16>
    %cst = arith.constant dense<0.000000e+00> : vector<64x32xf32>
    %2 = tpu.matmul %0, %1, %cst {dimension_numbers = #tpu.dot_dimension_numbers<[1], [0], [0], [1], [0, 0, 1, 1], [], []>} : vector<64x147xbf16>, vector<147x32xbf16>, vector<64x32xf32> -> vector<64x32xf32>
    %c0_3 = arith.constant 0 : index
    %c0_4 = arith.constant 0 : index
    %3 = vector.load %arg3[%c0_3, %c0_4] : memref<1x32xf32, #tpu.memory_space<vmem>>, vector<1x32xf32>
    %4 = vector.broadcast %3 : vector<1x32xf32> to vector<64x32xf32>
    %5 = arith.addf %2, %4 : vector<64x32xf32>
    %cst_5 = arith.constant 5.000000e-01 : f32
    %6 = vector.broadcast %cst_5 : f32 to vector<64x32xf32>
    %7 = arith.mulf %6, %5 : vector<64x32xf32>
    %cst_6 = arith.constant 0.707106769 : f32
    %8 = vector.broadcast %cst_6 : f32 to vector<64x32xf32>
    %9 = arith.mulf %5, %8 : vector<64x32xf32>
    %10 = math.absf %9 : vector<64x32xf32>
    %cst_7 = arith.constant 0.327591091 : f32
    %11 = vector.broadcast %cst_7 : f32 to vector<64x32xf32>
    %12 = arith.mulf %11, %10 : vector<64x32xf32>
    %cst_8 = arith.constant 1.000000e+00 : f32
    %13 = vector.broadcast %cst_8 : f32 to vector<64x32xf32>
    %14 = arith.addf %13, %12 : vector<64x32xf32>
    %15 = tpu.reciprocal %14 {approx = true} : vector<64x32xf32> -> vector<64x32xf32>
    %cst_9 = arith.constant 1.06140542 : f32
    %16 = vector.broadcast %cst_9 : f32 to vector<64x32xf32>
    %17 = arith.mulf %15, %16 : vector<64x32xf32>
    %cst_10 = arith.constant -1.45315206 : f32
    %18 = vector.broadcast %cst_10 : f32 to vector<64x32xf32>
    %19 = arith.addf %18, %17 : vector<64x32xf32>
    %20 = arith.mulf %15, %19 : vector<64x32xf32>
    %cst_11 = arith.constant 1.42141378 : f32
    %21 = vector.broadcast %cst_11 : f32 to vector<64x32xf32>
    %22 = arith.addf %21, %20 : vector<64x32xf32>
    %23 = arith.mulf %15, %22 : vector<64x32xf32>
    %cst_12 = arith.constant -0.284496725 : f32
    %24 = vector.broadcast %cst_12 : f32 to vector<64x32xf32>
    %25 = arith.addf %24, %23 : vector<64x32xf32>
    %26 = arith.mulf %15, %25 : vector<64x32xf32>
    %cst_13 = arith.constant 0.254829586 : f32
    %27 = vector.broadcast %cst_13 : f32 to vector<64x32xf32>
    %28 = arith.addf %27, %26 : vector<64x32xf32>
    %29 = arith.mulf %15, %28 : vector<64x32xf32>
    %cst_14 = arith.constant 0.000000e+00 : f32
    %30 = vector.broadcast %cst_14 : f32 to vector<64x32xf32>
    %31 = arith.subf %30, %10 : vector<64x32xf32>
    %32 = arith.mulf %31, %10 : vector<64x32xf32>
    %33 = math.exp %32 : vector<64x32xf32>
    %34 = arith.mulf %29, %33 : vector<64x32xf32>
    %cst_15 = arith.constant 1.000000e+00 : f32
    %35 = vector.broadcast %cst_15 : f32 to vector<64x32xf32>
    %36 = arith.subf %35, %34 : vector<64x32xf32>
    %cst_16 = arith.constant 0.000000e+00 : f32
    %37 = vector.broadcast %cst_16 : f32 to vector<64x32xf32>
    %38 = arith.cmpf oge, %9, %37 : vector<64x32xf32>
    %cst_17 = arith.constant 0.000000e+00 : f32
    %39 = vector.broadcast %cst_17 : f32 to vector<64x32xf32>
    %40 = arith.subf %39, %36 : vector<64x32xf32>
    %41 = arith.select %38, %36, %40 : vector<64x32xi1>, vector<64x32xf32>
    %cst_18 = arith.constant 1.000000e+00 : f32
    %42 = vector.broadcast %cst_18 : f32 to vector<64x32xf32>
    %43 = arith.addf %42, %41 : vector<64x32xf32>
    %44 = arith.mulf %7, %43 : vector<64x32xf32>
    %45 = vector.extract_strided_slice %44 {offsets = [0, 0], sizes = [16, 32], strides = [1, 1]} : vector<64x32xf32> to vector<16x32xf32>
    %46 = vector.extract_strided_slice %44 {offsets = [16, 0], sizes = [16, 32], strides = [1, 1]} : vector<64x32xf32> to vector<16x32xf32>
    %47 = vector.extract_strided_slice %44 {offsets = [32, 0], sizes = [16, 32], strides = [1, 1]} : vector<64x32xf32> to vector<16x32xf32>
    %48 = vector.extract_strided_slice %44 {offsets = [48, 0], sizes = [16, 32], strides = [1, 1]} : vector<64x32xf32> to vector<16x32xf32>
    %49 = tpu.concatenate %45, %46, %47, %48 in 1 : vector<16x32xf32>, vector<16x32xf32>, vector<16x32xf32>, vector<16x32xf32> -> vector<16x128xf32>
    %50 = arith.truncf %49 : vector<16x128xf32> to vector<16x128xbf16>
    %c0_19 = arith.constant 0 : index
    %c0_20 = arith.constant 0 : index
    %51 = vector.load %arg4[%c0_19, %c0_20] : memref<16x128xbf16, #tpu.memory_space<vmem>>, vector<16x128xbf16>
    tpu.vector_store %arg4[%c0_19, %c0_20], %50 {strides = array<i32>} : memref<16x128xbf16, #tpu.memory_space<vmem>>, vector<16x128xbf16>,
    return
  }
  func.func @transform_0(%arg0: i32) -> (i32, i32) {
    %c0_i32 = arith.constant 0 : i32
    %c0_i32_0 = arith.constant 0 : i32
    return %arg0, %c0_i32 : i32, i32
  }
  func.func @transform_1(%arg0: i32) -> (i32, i32) {
    %c0_i32 = arith.constant 0 : i32
    %c0_i32_0 = arith.constant 0 : i32
    %c0_i32_1 = arith.constant 0 : i32
    return %c0_i32, %c0_i32_0 : i32, i32
  }
  func.func @transform_2(%arg0: i32) -> (i32, i32) {
    %c0_i32 = arith.constant 0 : i32
    %c0_i32_0 = arith.constant 0 : i32
    %c0_i32_1 = arith.constant 0 : i32
    return %c0_i32, %c0_i32_0 : i32, i32
  }
  func.func @transform_3(%arg0: i32) -> (i32, i32) {
    %c0_i32 = arith.constant 0 : i32
    %c0_i32_0 = arith.constant 0 : i32
    return %arg0, %c0_i32 : i32, i32
  }
}

module attributes {stable_mosaic.version = 11 : i64} {
  func.func @_conv_gelu_kernel(%arg0: i32, %arg1: memref<64x288xbf16, #tpu.memory_space<vmem>>, %arg2: memref<288x32xbf16, #tpu.memory_space<vmem>>, %arg3: memref<1x32xf32, #tpu.memory_space<vmem>>, %arg4: memref<16x128xbf16, #tpu.memory_space<vmem>>) attributes {dimension_semantics = [#tpu.dimension_semantics<parallel>], iteration_bounds = array<i64: 1>, scalar_prefetch = 0 : i64, scratch_operands = 0 : i64, tpu.core_type = #tpu.core_type<tc>, window_params = [{transform_indices = @transform_0, window_bounds = array<i64: 64, 288>}, {pipeline_mode = #tpu.pipeline_mode<synchronous>, transform_indices = @transform_1, window_bounds = array<i64: 288, 32>}, {pipeline_mode = #tpu.pipeline_mode<synchronous>, transform_indices = @transform_2, window_bounds = array<i64: 1, 32>}, {transform_indices = @transform_3, window_bounds = array<i64: 16, 128>}]} {
    %c0 = arith.constant 0 : index
    %c0_0 = arith.constant 0 : index
    %0 = vector.load %arg1[%c0, %c0_0] : memref<64x288xbf16, #tpu.memory_space<vmem>>, vector<64x288xbf16>
    %c0_1 = arith.constant 0 : index
    %c0_2 = arith.constant 0 : index
    %1 = vector.load %arg2[%c0_1, %c0_2] : memref<288x32xbf16, #tpu.memory_space<vmem>>, vector<288x32xbf16>
    %cst = arith.constant dense<0.000000e+00> : vector<64x32xf32>
    %2 = tpu.matmul %0, %1, %cst {dimension_numbers = #tpu.dot_dimension_numbers<[1], [0], [0], [1], [0, 0, 1, 1], [], []>} : vector<64x288xbf16>, vector<288x32xbf16>, vector<64x32xf32> -> vector<64x32xf32>
    %c0_3 = arith.constant 0 : index
    %c0_4 = arith.constant 0 : index
    %3 = vector.load %arg3[%c0_3, %c0_4] : memref<1x32xf32, #tpu.memory_space<vmem>>, vector<1x32xf32>
    %4 = vector.broadcast %3 : vector<1x32xf32> to vector<64x32xf32>
    %5 = arith.addf %2, %4 : vector<64x32xf32>
    %cst_5 = arith.constant 5.000000e-01 : f32
    %6 = vector.broadcast %cst_5 : f32 to vector<64x32xf32>
    %7 = arith.mulf %6, %5 : vector<64x32xf32>
    %cst_6 = arith.constant 0.707106769 : f32
    %8 = vector.broadcast %cst_6 : f32 to vector<64x32xf32>
    %9 = arith.mulf %5, %8 : vector<64x32xf32>
    %10 = math.absf %9 : vector<64x32xf32>
    %cst_7 = arith.constant 0.327591091 : f32
    %11 = vector.broadcast %cst_7 : f32 to vector<64x32xf32>
    %12 = arith.mulf %11, %10 : vector<64x32xf32>
    %cst_8 = arith.constant 1.000000e+00 : f32
    %13 = vector.broadcast %cst_8 : f32 to vector<64x32xf32>
    %14 = arith.addf %13, %12 : vector<64x32xf32>
    %15 = tpu.reciprocal %14 {approx = true} : vector<64x32xf32> -> vector<64x32xf32>
    %cst_9 = arith.constant 1.06140542 : f32
    %16 = vector.broadcast %cst_9 : f32 to vector<64x32xf32>
    %17 = arith.mulf %15, %16 : vector<64x32xf32>
    %cst_10 = arith.constant -1.45315206 : f32
    %18 = vector.broadcast %cst_10 : f32 to vector<64x32xf32>
    %19 = arith.addf %18, %17 : vector<64x32xf32>
    %20 = arith.mulf %15, %19 : vector<64x32xf32>
    %cst_11 = arith.constant 1.42141378 : f32
    %21 = vector.broadcast %cst_11 : f32 to vector<64x32xf32>
    %22 = arith.addf %21, %20 : vector<64x32xf32>
    %23 = arith.mulf %15, %22 : vector<64x32xf32>
    %cst_12 = arith.constant -0.284496725 : f32
    %24 = vector.broadcast %cst_12 : f32 to vector<64x32xf32>
    %25 = arith.addf %24, %23 : vector<64x32xf32>
    %26 = arith.mulf %15, %25 : vector<64x32xf32>
    %cst_13 = arith.constant 0.254829586 : f32
    %27 = vector.broadcast %cst_13 : f32 to vector<64x32xf32>
    %28 = arith.addf %27, %26 : vector<64x32xf32>
    %29 = arith.mulf %15, %28 : vector<64x32xf32>
    %cst_14 = arith.constant 0.000000e+00 : f32
    %30 = vector.broadcast %cst_14 : f32 to vector<64x32xf32>
    %31 = arith.subf %30, %10 : vector<64x32xf32>
    %32 = arith.mulf %31, %10 : vector<64x32xf32>
    %33 = math.exp %32 : vector<64x32xf32>
    %34 = arith.mulf %29, %33 : vector<64x32xf32>
    %cst_15 = arith.constant 1.000000e+00 : f32
    %35 = vector.broadcast %cst_15 : f32 to vector<64x32xf32>
    %36 = arith.subf %35, %34 : vector<64x32xf32>
    %cst_16 = arith.constant 0.000000e+00 : f32
    %37 = vector.broadcast %cst_16 : f32 to vector<64x32xf32>
    %38 = arith.cmpf oge, %9, %37 : vector<64x32xf32>
    %cst_17 = arith.constant 0.000000e+00 : f32
    %39 = vector.broadcast %cst_17 : f32 to vector<64x32xf32>
    %40 = arith.subf %39, %36 : vector<64x32xf32>
    %41 = arith.select %38, %36, %40 : vector<64x32xi1>, vector<64x32xf32>
    %cst_18 = arith.constant 1.000000e+00 : f32
    %42 = vector.broadcast %cst_18 : f32 to vector<64x32xf32>
    %43 = arith.addf %42, %41 : vector<64x32xf32>
    %44 = arith.mulf %7, %43 : vector<64x32xf32>
    %45 = vector.extract_strided_slice %44 {offsets = [0, 0], sizes = [16, 32], strides = [1, 1]} : vector<64x32xf32> to vector<16x32xf32>
    %46 = vector.extract_strided_slice %44 {offsets = [16, 0], sizes = [16, 32], strides = [1, 1]} : vector<64x32xf32> to vector<16x32xf32>
    %47 = vector.extract_strided_slice %44 {offsets = [32, 0], sizes = [16, 32], strides = [1, 1]} : vector<64x32xf32> to vector<16x32xf32>
    %48 = vector.extract_strided_slice %44 {offsets = [48, 0], sizes = [16, 32], strides = [1, 1]} : vector<64x32xf32> to vector<16x32xf32>
    %49 = tpu.concatenate %45, %46, %47, %48 in 1 : vector<16x32xf32>, vector<16x32xf32>, vector<16x32xf32>, vector<16x32xf32> -> vector<16x128xf32>
    %50 = arith.truncf %49 : vector<16x128xf32> to vector<16x128xbf16>
    %c0_19 = arith.constant 0 : index
    %c0_20 = arith.constant 0 : index
    %51 = vector.load %arg4[%c0_19, %c0_20] : memref<16x128xbf16, #tpu.memory_space<vmem>>, vector<16x128xbf16>
    tpu.vector_store %arg4[%c0_19, %c0_20], %50 {strides = array<i32>} : memref<16x128xbf16, #tpu.memory_space<vmem>>, vector<16x128xbf16>,
    return
  }
  func.func @transform_0(%arg0: i32) -> (i32, i32) {
    %c0_i32 = arith.constant 0 : i32
    %c0_i32_0 = arith.constant 0 : i32
    return %arg0, %c0_i32 : i32, i32
  }
  func.func @transform_1(%arg0: i32) -> (i32, i32) {
    %c0_i32 = arith.constant 0 : i32
    %c0_i32_0 = arith.constant 0 : i32
    %c0_i32_1 = arith.constant 0 : i32
    return %c0_i32, %c0_i32_0 : i32, i32
  }
  func.func @transform_2(%arg0: i32) -> (i32, i32) {
    %c0_i32 = arith.constant 0 : i32
    %c0_i32_0 = arith.constant 0 : i32
    %c0_i32_1 = arith.constant 0 : i32
    return %c0_i32, %c0_i32_0 : i32, i32
  }
  func.func @transform_3(%arg0: i32) -> (i32, i32) {
    %c0_i32 = arith.constant 0 : i32
    %c0_i32_0 = arith.constant 0 : i32
    return %arg0, %c0_i32 : i32, i32
  }
}

module attributes {stable_mosaic.version = 11 : i64} {
  func.func @_conv_gelu_pool_kernel(%arg0: i32, %arg1: memref<1x4x288xbf16, #tpu.memory_space<vmem>>, %arg2: memref<288x32xbf16, #tpu.memory_space<vmem>>, %arg3: memref<1x32xf32, #tpu.memory_space<vmem>>, %arg4: memref<1x1x32xf32, #tpu.memory_space<vmem>>) attributes {dimension_semantics = [#tpu.dimension_semantics<parallel>], iteration_bounds = array<i64: 2>, scalar_prefetch = 0 : i64, scratch_operands = 0 : i64, tpu.core_type = #tpu.core_type<tc>, window_params = [{transform_indices = @transform_0, window_bounds = array<i64: 1, 4, 288>}, {pipeline_mode = #tpu.pipeline_mode<synchronous>, transform_indices = @transform_1, window_bounds = array<i64: 288, 32>}, {pipeline_mode = #tpu.pipeline_mode<synchronous>, transform_indices = @transform_2, window_bounds = array<i64: 1, 32>}, {transform_indices = @transform_3, window_bounds = array<i64: 1, 1, 32>}]} {
    %c0 = arith.constant 0 : index
    %c0_0 = arith.constant 0 : index
    %c0_1 = arith.constant 0 : index
    %0 = vector.load %arg1[%c0, %c0_0, %c0_1] : memref<1x4x288xbf16, #tpu.memory_space<vmem>>, vector<1x4x288xbf16>
    %1 = vector.shape_cast %0 : vector<1x4x288xbf16> to vector<4x288xbf16>
    %c0_2 = arith.constant 0 : index
    %c0_3 = arith.constant 0 : index
    %2 = vector.load %arg2[%c0_2, %c0_3] : memref<288x32xbf16, #tpu.memory_space<vmem>>, vector<288x32xbf16>
    %cst = arith.constant dense<0.000000e+00> : vector<4x32xf32>
    %3 = tpu.matmul %1, %2, %cst {dimension_numbers = #tpu.dot_dimension_numbers<[1], [0], [0], [1], [0, 0, 1, 1], [], []>} : vector<4x288xbf16>, vector<288x32xbf16>, vector<4x32xf32> -> vector<4x32xf32>
    %c0_4 = arith.constant 0 : index
    %c0_5 = arith.constant 0 : index
    %4 = vector.load %arg3[%c0_4, %c0_5] : memref<1x32xf32, #tpu.memory_space<vmem>>, vector<1x32xf32>
    %5 = vector.broadcast %4 : vector<1x32xf32> to vector<4x32xf32>
    %6 = arith.addf %3, %5 : vector<4x32xf32>
    %cst_6 = arith.constant 5.000000e-01 : f32
    %7 = vector.broadcast %cst_6 : f32 to vector<4x32xf32>
    %8 = arith.mulf %7, %6 : vector<4x32xf32>
    %cst_7 = arith.constant 0.707106769 : f32
    %9 = vector.broadcast %cst_7 : f32 to vector<4x32xf32>
    %10 = arith.mulf %6, %9 : vector<4x32xf32>
    %11 = math.absf %10 : vector<4x32xf32>
    %cst_8 = arith.constant 0.327591091 : f32
    %12 = vector.broadcast %cst_8 : f32 to vector<4x32xf32>
    %13 = arith.mulf %12, %11 : vector<4x32xf32>
    %cst_9 = arith.constant 1.000000e+00 : f32
    %14 = vector.broadcast %cst_9 : f32 to vector<4x32xf32>
    %15 = arith.addf %14, %13 : vector<4x32xf32>
    %16 = tpu.reciprocal %15 {approx = true} : vector<4x32xf32> -> vector<4x32xf32>
    %cst_10 = arith.constant 1.06140542 : f32
    %17 = vector.broadcast %cst_10 : f32 to vector<4x32xf32>
    %18 = arith.mulf %16, %17 : vector<4x32xf32>
    %cst_11 = arith.constant -1.45315206 : f32
    %19 = vector.broadcast %cst_11 : f32 to vector<4x32xf32>
    %20 = arith.addf %19, %18 : vector<4x32xf32>
    %21 = arith.mulf %16, %20 : vector<4x32xf32>
    %cst_12 = arith.constant 1.42141378 : f32
    %22 = vector.broadcast %cst_12 : f32 to vector<4x32xf32>
    %23 = arith.addf %22, %21 : vector<4x32xf32>
    %24 = arith.mulf %16, %23 : vector<4x32xf32>
    %cst_13 = arith.constant -0.284496725 : f32
    %25 = vector.broadcast %cst_13 : f32 to vector<4x32xf32>
    %26 = arith.addf %25, %24 : vector<4x32xf32>
    %27 = arith.mulf %16, %26 : vector<4x32xf32>
    %cst_14 = arith.constant 0.254829586 : f32
    %28 = vector.broadcast %cst_14 : f32 to vector<4x32xf32>
    %29 = arith.addf %28, %27 : vector<4x32xf32>
    %30 = arith.mulf %16, %29 : vector<4x32xf32>
    %cst_15 = arith.constant 0.000000e+00 : f32
    %31 = vector.broadcast %cst_15 : f32 to vector<4x32xf32>
    %32 = arith.subf %31, %11 : vector<4x32xf32>
    %33 = arith.mulf %32, %11 : vector<4x32xf32>
    %34 = math.exp %33 : vector<4x32xf32>
    %35 = arith.mulf %30, %34 : vector<4x32xf32>
    %cst_16 = arith.constant 1.000000e+00 : f32
    %36 = vector.broadcast %cst_16 : f32 to vector<4x32xf32>
    %37 = arith.subf %36, %35 : vector<4x32xf32>
    %cst_17 = arith.constant 0.000000e+00 : f32
    %38 = vector.broadcast %cst_17 : f32 to vector<4x32xf32>
    %39 = arith.cmpf oge, %10, %38 : vector<4x32xf32>
    %cst_18 = arith.constant 0.000000e+00 : f32
    %40 = vector.broadcast %cst_18 : f32 to vector<4x32xf32>
    %41 = arith.subf %40, %37 : vector<4x32xf32>
    %42 = arith.select %39, %37, %41 : vector<4x32xi1>, vector<4x32xf32>
    %cst_19 = arith.constant 1.000000e+00 : f32
    %43 = vector.broadcast %cst_19 : f32 to vector<4x32xf32>
    %44 = arith.addf %43, %42 : vector<4x32xf32>
    %45 = arith.mulf %8, %44 : vector<4x32xf32>
    %cst_20 = arith.constant dense<0.000000e+00> : vector<32xf32>
    %46 = vector.multi_reduction <add>, %45, %cst_20 [0] : vector<4x32xf32> to vector<32xf32>
    %47 = vector.shape_cast %46 : vector<32xf32> to vector<1x32xf32>
    %cst_21 = arith.constant 4.000000e+00 : f32
    %48 = vector.broadcast %cst_21 : f32 to vector<1x32xf32>
    %49 = arith.divf %47, %48 : vector<1x32xf32>
    %c0_22 = arith.constant 0 : index
    %c0_23 = arith.constant 0 : index
    %c0_24 = arith.constant 0 : index
    %50 = vector.load %arg4[%c0_22, %c0_23, %c0_24] : memref<1x1x32xf32, #tpu.memory_space<vmem>>, vector<1x1x32xf32>
    %51 = vector.shape_cast %50 : vector<1x1x32xf32> to vector<1x32xf32>
    %52 = vector.shape_cast %49 : vector<1x32xf32> to vector<1x1x32xf32>
    tpu.vector_store %arg4[%c0_22, %c0_23, %c0_24], %52 {strides = array<i32>} : memref<1x1x32xf32, #tpu.memory_space<vmem>>, vector<1x1x32xf32>,
    return
  }
  func.func @transform_0(%arg0: i32) -> (i32, i32, i32) {
    %c0_i32 = arith.constant 0 : i32
    %c0_i32_0 = arith.constant 0 : i32
    %c0_i32_1 = arith.constant 0 : i32
    return %arg0, %c0_i32, %c0_i32_0 : i32, i32, i32
  }
  func.func @transform_1(%arg0: i32) -> (i32, i32) {
    %c0_i32 = arith.constant 0 : i32
    %c0_i32_0 = arith.constant 0 : i32
    %c0_i32_1 = arith.constant 0 : i32
    return %c0_i32, %c0_i32_0 : i32, i32
  }
  func.func @transform_2(%arg0: i32) -> (i32, i32) {
    %c0_i32 = arith.constant 0 : i32
    %c0_i32_0 = arith.constant 0 : i32
    %c0_i32_1 = arith.constant 0 : i32
    return %c0_i32, %c0_i32_0 : i32, i32
  }
  func.func @transform_3(%arg0: i32) -> (i32, i32, i32) {
    %c0_i32 = arith.constant 0 : i32
    %c0_i32_0 = arith.constant 0 : i32
    %c0_i32_1 = arith.constant 0 : i32
    return %arg0, %c0_i32, %c0_i32_0 : i32, i32, i32
  }
}

</mosaic_0001>

<llo_original>
// kernel: condition_net.3
$region0: #{condition_net.3}
  #allocation0 [shape = 'u32[]', space=smem, size = 0x4, offset = 0x4, fixed_abs, tag = 'smem constant byte address 0x4 - core index']
  #allocation1 [shape = 'u32[144,128]{1,0:T(1,128)}', space=vmem, size = 0x12000, scoped, tag = 'internal scratch']
  %s0 = inlined_call_operand.vmem [shape: bf16[128,147], index: 0, kind: input, shape index: {}]
  %s1 = inlined_call_operand.vmem [shape: bf16[147,32], index: 1, kind: input, shape index: {}]
  %s2 = inlined_call_operand.vmem [shape: f32[1,32], index: 2, kind: input, shape index: {}]
  %s3 = inlined_call_operand.vmem [shape: bf16[32,128], index: 3, kind: output, shape index: {}]
  %s4 = sld [smem:[#allocation0]]
  $region45: #{condition_net.3} parent=0
    _
  %s6 = ssub.s32 1, %s4
  %s7 = scalar_select 0, %s6, %s4
  loop: start=0, step=1, limit=4
  $region2: #{condition_net.3} parent=0 // loop_pre_header
    _
  $region3: #{condition_net.3} parent=0 // loop_header
    %s9 = sphi 0, %s13
    %p10 = scmp.ge.s32.totalorder %s9, 4
    %s19 = sphi 0, %s21
    %s22 = sphi 0, %s19
    %s23 = sphi 0, %s22
    %s39 = sphi 0, %s23
    %s43 = sphi 0, %s43
    %s45 = sphi 0, %s43
    %s46 = sphi 0, %s45
    %s60 = sphi 0, %s46
    %s64 = sphi 0, %s64
    %s66 = sphi 0, %s64
    %s67 = sphi 0, %s66
    %s81 = sphi 0, %s67
    %s87 = sphi 0, %s89
    %s90 = sphi 0, %s87
    %s91 = sphi 0, %s90
    %s107 = sphi 0, %s91
  $region4: #{condition_net.3} parent=0 // loop_header_branch
    %12 = sbr.rel (%p10) target = $region8
  $region5: #{condition_net.3} parent=0 // loop_body
    %s14 = ssub.s32 %s9, 1
    %s15 = ssub.s32 %s9, 2
    %s16 = sadd.s32 %s9, 1
    %s17 = ssub.s32 %s9, %s16
    %p18 = scmp.eq.s32.totalorder %s17, 0
    %s20 = sadd.s32 %s19, 1
    %s21 = scalar_select %p18, %s19, %s20
    %p24 = pneg %p18
    %p25 = scmp.eq.s32.totalorder %s9, 1
    %p26 = por %p24, %p25
    %p27 = scmp.ne.s32.totalorder %s19, %s22
    %p28 = scmp.eq.s32.totalorder %s9, 0
    %p29 = por %p27, %p28
    %p30 = scmp.ne.s32.totalorder %s19, %s22
    %p31 = scmp.eq.s32.totalorder %s14, 1
    %p32 = por %p30, %p31
    %p33 = scmp.ne.s32.totalorder %s22, %s23
    %p34 = scmp.eq.s32.totalorder %s14, 0
    %p35 = por %p33, %p34
    %p36 = scmp.ne.s32.totalorder %s22, %s23
    %p37 = scmp.eq.s32.totalorder %s15, 1
    %p38 = por %p36, %p37
    %p40 = scmp.ne.s32.totalorder %s23, %s39
    %p41 = scmp.eq.s32.totalorder %s15, 0
    %p42 = por %p40, %p41
    %s44 = sadd.s32 %s43, 1
    %p47 = scmp.eq.s32.totalorder %s9, 1
    %p48 = scmp.ne.s32.totalorder %s43, %s45
    %p49 = scmp.eq.s32.totalorder %s9, 0
    %p50 = por %p48, %p49
    %p51 = scmp.ne.s32.totalorder %s43, %s45
    %p52 = scmp.eq.s32.totalorder %s14, 1
    %p53 = por %p51, %p52
    %p54 = scmp.ne.s32.totalorder %s45, %s46
    %p55 = scmp.eq.s32.totalorder %s14, 0
    %p56 = por %p54, %p55
    %p57 = scmp.ne.s32.totalorder %s45, %s46
    %p58 = scmp.eq.s32.totalorder %s15, 1
    %p59 = por %p57, %p58
    %p61 = scmp.ne.s32.totalorder %s46, %s60
    %p62 = scmp.eq.s32.totalorder %s15, 0
    %p63 = por %p61, %p62
    %s65 = sadd.s32 %s64, 1
    %p68 = scmp.eq.s32.totalorder %s9, 1
    %p69 = scmp.ne.s32.totalorder %s64, %s66
    %p70 = scmp.eq.s32.totalorder %s9, 0
    %p71 = por %p69, %p70
    %p72 = scmp.ne.s32.totalorder %s64, %s66
    %p73 = scmp.eq.s32.totalorder %s14, 1
    %p74 = por %p72, %p73
    %p75 = scmp.ne.s32.totalorder %s66, %s67
    %p76 = scmp.eq.s32.totalorder %s14, 0
    %p77 = por %p75, %p76
    %p78 = scmp.ne.s32.totalorder %s66, %s67
    %p79 = scmp.eq.s32.totalorder %s15, 1
    %p80 = por %p78, %p79
    %p82 = scmp.ne.s32.totalorder %s67, %s81
    %p83 = scmp.eq.s32.totalorder %s15, 0
    %p84 = por %p82, %p83
    %s85 = ssub.s32 %s9, %s16
    %p86 = scmp.eq.s32.totalorder %s85, 0
    %s88 = sadd.s32 %s87, 1
    %s89 = scalar_select %p86, %s87, %s88
    %p92 = pneg %p86
    %p93 = scmp.eq.s32.totalorder %s9, 1
    %p94 = por %p92, %p93
    %p95 = scmp.ne.s32.totalorder %s87, %s90
    %p96 = scmp.eq.s32.totalorder %s9, 0
    %p97 = por %p95, %p96
    %p98 = scmp.ne.s32.totalorder %s87, %s90
    %p99 = scmp.eq.s32.totalorder %s14, 1
    %p100 = por %p98, %p99
    %p101 = scmp.ne.s32.totalorder %s90, %s91
    %p102 = scmp.eq.s32.totalorder %s14, 0
    %p103 = por %p101, %p102
    %p104 = scmp.ne.s32.totalorder %s90, %s91
    %p105 = scmp.eq.s32.totalorder %s15, 1
    %p106 = por %p104, %p105
    %p108 = scmp.ne.s32.totalorder %s91, %s107
    %p109 = scmp.eq.s32.totalorder %s15, 0
    %p110 = por %p108, %p109
    %p111 = scmp.le.s32.totalorder 1, %s9
    %p112 = scmp.lt.s32.totalorder %s9, 3
    %p113 = pnand %p111, %p112
    %p114 = pneg %p113
    // Predicated region
    $region9: #{condition_net.3} parent=5 // pred_check
      _
    $region10: #{condition_net.3} parent=5 // pred_check_branch
      %116 = sbr.rel (%p113) target = $region12
    $region11: #{condition_net.3} parent=5 // pred_region
      %s117 = ssub.s32 %s9, 1
      // Predicated region
      $region13: #{condition_net.3} parent=11 // pred_check
        %p118 = pneg %p56
      $region14: #{condition_net.3} parent=11 // pred_check_branch
        %120 = sbr.rel (%p118) target = $region16
      $region15: #{condition_net.3} parent=11 // pred_region
        _
      $region16: #{condition_net.3} parent=11 // pred_fallthru
        _
      // Predicated region
      $region17: #{condition_net.3} parent=11 // pred_check
        %p121 = pneg %p77
      $region18: #{condition_net.3} parent=11 // pred_check_branch
        %123 = sbr.rel (%p121) target = $region20
      $region19: #{condition_net.3} parent=11 // pred_region
        _
      $region20: #{condition_net.3} parent=11 // pred_fallthru
        _
    $region12: #{condition_net.3} parent=5 // pred_fallthru
      _
    %p124 = scmp.lt.s32.totalorder %s9, 2
    // Predicated region
    $region21: #{condition_net.3} parent=5 // pred_check
      %p125 = pneg %p124
    $region22: #{condition_net.3} parent=5 // pred_check_branch
      %127 = sbr.rel (%p125) target = $region24
    $region23: #{condition_net.3} parent=5 // pred_region
      // Predicated region
      $region25: #{condition_net.3} parent=23 // pred_check
        %p128 = pneg %p29
      $region26: #{condition_net.3} parent=23 // pred_check_branch
        %130 = sbr.rel (%p128) target = $region28
      $region27: #{condition_net.3} parent=23 // pred_region
        %s131 = smul.u32 8, %s9
        %p132 = scmp.lt.s32.totalorder %s131, 15
        %s133 = scalar_select %p132, %s131, 15
        %s134 = smul.addr %s133, 2
        %s135 = smul.addr %s134, 4
        %s136 = scalar_lea.vmem %s0, %s135
        %s137 = smul.u32 8, %s9
      $region28: #{condition_net.3} parent=23 // pred_fallthru
        _
    $region24: #{condition_net.3} parent=5 // pred_fallthru
      _
    %p138 = scmp.le.s32.totalorder 1, %s9
    %p139 = scmp.lt.s32.totalorder %s9, 3
    %p140 = pnand %p138, %p139
    %p141 = pneg %p140
    // Predicated region
    $region29: #{condition_net.3} parent=5 // pred_check
      _
    $region30: #{condition_net.3} parent=5 // pred_check_branch
      %143 = sbr.rel (%p140) target = $region32
    $region31: #{condition_net.3} parent=5 // pred_region
      %s144 = ssub.s32 %s9, 1
      %s145 = smul.u32 8, %s14
      %p146 = scmp.lt.s32.totalorder %s145, 15
      %s147 = scalar_select %p146, %s145, 15
      %s148 = smul.addr %s147, 2
      %s149 = smul.addr %s148, 4
      %s150 = scalar_lea.vmem %s0, %s149
      %p151 = pneg %p35
      %p152 = pneg %p32
      %p153 = pneg %p56
      %p154 = pneg %p53
      %p155 = pneg %p77
      %p156 = pneg %p74
      %p157 = pneg %p103
      %p158 = pneg %p100
      %s159 = smul.u32 2, %s14
      %p160 = scmp.lt.s32.totalorder %s159, 3
      %s161 = scalar_select %p160, %s159, 3
      %s162 = smul.addr %s161, 4
      %s163 = scalar_lea.vmem %s3, %s162
      %s164 = smul.u32 8, %s14
      %p165 = scmp.lt.s32.totalorder %s164, 15
      %s166 = scalar_select %p165, %s164, 15
      %s167 = smul.addr %s166, 2
      %s168 = smul.addr %s167, 4
      %s169 = scalar_lea.vmem %s0, %s168
      %s170 = smul.u32 8, %s14
      %s171 = smul.u32 2, %s14
      %p172 = scmp.lt.s32.totalorder %s171, 3
      %s173 = scalar_select %p172, %s171, 3
      %s174 = smul.addr %s173, 4
      %s175 = scalar_lea.vmem %s3, %s174
      %s176 = smul.u32 2, %s14
      %v178 = vld [vmem:[%s169] sm:$0xff]
      %v179 = vld [vmem:[%s169 + $0x8] sm:$0xff]
      %v180 = vld [vmem:[%s169 + $0x10] sm:$0xff]
      %v181 = vld [vmem:[%s169 + $0x18] sm:$0xff]
      %v182 = vld [vmem:[%s169 + $0x20] sm:$0xff]
      %v183 = vld [vmem:[%s169 + $0x28] sm:$0xff]
      %v184 = vld [vmem:[%s169 + $0x30] sm:$0xff]
      %v185 = vld [vmem:[%s169 + $0x38] sm:$0xff]
      %v186 = vld [vmem:[%s1] sm:$0xf]
      %v187 = vld [vmem:[%s1 + $0x4] sm:$0xf]
      %v188 = vld [vmem:[%s1 + $0x8] sm:$0xf]
      %v189 = vld [vmem:[%s1 + $0xc] sm:$0xf]
      %v190 = vld [vmem:[%s1 + $0x10] sm:$0xf]
      %v191 = vld [vmem:[%s1 + $0x14] sm:$0xf]
      %v192 = vld [vmem:[%s1 + $0x18] sm:$0xf]
      %v193 = vld [vmem:[%s1 + $0x1c] sm:$0xf]
      %v194 = vld [vmem:[%s1 + $0x20] sm:$0xf]
      %v195 = vld [vmem:[%s1 + $0x24] sm:$0xf]
      %v196 = vld [vmem:[%s1 + $0x28] sm:$0xf]
      %v197 = vld [vmem:[%s1 + $0x2c] sm:$0xf]
      %v198 = vld [vmem:[%s1 + $0x30] sm:$0xf]
      %v199 = vld [vmem:[%s1 + $0x34] sm:$0xf]
      %v200 = vld [vmem:[%s1 + $0x38] sm:$0xf]
      %v201 = vld [vmem:[%s1 + $0x3c] sm:$0xf]
      %v202 = vld [vmem:[%s1 + $0x40] sm:$0xf]
      %v203 = vld [vmem:[%s1 + $0x44] sm:$0xf]
      %v204 = vld [vmem:[%s1 + $0x48] sm:$0x3]
      %v205 = vld [vmem:[%s2] sm:$0x1]
      %v207 = vlaneseq
      %v208 = vshrl.u32 %v207, 7
      %v209 = vsub.s32 0, %v208
      %v210 = vrot.slane %v205, %v209
      %v220 = vunpack.c.l.b16 %v178
      %v221 = vunpack.c.h.b16 %v178
      %v222 = vunpack.c.l.b16 %v179
      %v223 = vunpack.c.h.b16 %v179
      %v224 = vunpack.c.l.b16 %v180
      %v225 = vunpack.c.h.b16 %v180
      %v226 = vunpack.c.l.b16 %v181
      %v227 = vunpack.c.h.b16 %v181
      %v228 = vunpack.c.l.b16 %v182
      %v229 = vunpack.c.h.b16 %v182
      %v230 = vunpack.c.l.b16 %v183
      %v231 = vunpack.c.h.b16 %v183
      %v232 = vunpack.c.l.b16 %v184
      %v233 = vunpack.c.h.b16 %v184
      %v234 = vunpack.c.l.b16 %v185
      %v235 = vunpack.c.h.b16 %v185
      %v236 = vpack.c.b16 %v222, %v220
      %v237 = vpack.c.b16 %v223, %v221
      %v238 = vpack.c.b16 %v226, %v224
      %v239 = vpack.c.b16 %v227, %v225
      %v240 = vpack.c.b16 %v230, %v228
      %v241 = vpack.c.b16 %v231, %v229
      %v242 = vpack.c.b16 %v234, %v232
      %v243 = vpack.c.b16 %v235, %v233
      %v267 = vunpack.c.l.b16 %v186
      %v268 = vunpack.c.l.b16 %v187
      %v269 = vunpack.c.l.b16 %v188
      %v270 = vunpack.c.l.b16 %v189
      %v271 = vunpack.c.l.b16 %v190
      %v272 = vunpack.c.l.b16 %v191
      %v273 = vunpack.c.l.b16 %v192
      %v274 = vunpack.c.l.b16 %v193
      %v275 = vunpack.c.l.b16 %v194
      %v276 = vunpack.c.l.b16 %v195
      %v277 = vunpack.c.l.b16 %v196
      %v278 = vunpack.c.l.b16 %v197
      %v279 = vunpack.c.l.b16 %v198
      %v280 = vunpack.c.l.b16 %v199
      %v281 = vunpack.c.l.b16 %v200
      %v282 = vunpack.c.l.b16 %v201
      %v283 = vunpack.c.l.b16 %v202
      %v284 = vunpack.c.l.b16 %v203
      %v285 = vunpack.c.l.b16 %v204
      %v286 = vpack.c.b16 %v268, %v267
      %v287 = vpack.c.b16 %v270, %v269
      %v288 = vpack.c.b16 %v272, %v271
      %v289 = vpack.c.b16 %v274, %v273
      %v290 = vpack.c.b16 %v276, %v275
      %v291 = vpack.c.b16 %v278, %v277
      %v292 = vpack.c.b16 %v280, %v279
      %v293 = vpack.c.b16 %v282, %v281
      %v294 = vpack.c.b16 %v284, %v283
      %v295 = vpack.c.b16 %v285, %v285
      %vm305 = vcmask 154624
      %v307 = vsel %vm305, %v237, 0
      %v310 = vsel %vm305, %v239, 0
      %v313 = vsel %vm305, %v241, 0
      %v316 = vsel %vm305, %v243, 0
      %vm318 = vcmask 1040384
      %vm319 = vcmask 1041408
      %v320 = vsel %vm318, 4294967295, 65535
      %v321 = vsel %vm319, %v320, 0
      %v323 = vand.u32 %v295, %v321
      %325 = vmatprep.subr.bf16.mxu0 0
      %326 = vmatpush1.bf16.msra.mxu0 %v293
      %327 = vmatprep.subr.bf16.mxu0 0
      %328 = vmatpush1.bf16.msra.mxu0 %v292
      %329 = vmatprep.subr.bf16.mxu0 0
      %330 = vmatpush1.bf16.msra.mxu0 %v291
      %331 = vmatprep.subr.bf16.mxu0 0
      %332 = vmatpush1.bf16.msra.mxu0 %v290
      %333 = vmatprep.subr.bf16.mxu0 0
      %334 = vmatpush1.bf16.msra.mxu0 %v289
      %335 = vmatprep.subr.bf16.mxu0 0
      %336 = vmatpush1.bf16.msra.mxu0 %v288
      %337 = vmatprep.subr.bf16.mxu0 0
      %338 = vmatpush1.bf16.msra.mxu0 %v287
      %339 = vmatprep.subr.bf16.mxu0 0
      %340 = vmatpush1.bf16.msra.mxu0 %v286
      %341 = vmatprep.subr.bf16.mxu0 0
      %342 = vmatpush2.bf16.msra.mxu0 0
      %343 = vmatprep.subr.bf16.mxu0 0
      %344 = vmatpush2.bf16.msra.mxu0 0
      %345 = vmatprep.subr.bf16.mxu0 0
      %346 = vmatpush2.bf16.msra.mxu0 0
      %347 = vmatprep.subr.bf16.mxu0 0
      %348 = vmatpush2.bf16.msra.mxu0 0
      %349 = vmatprep.subr.bf16.mxu0 0
      %350 = vmatpush2.bf16.msra.mxu0 0
      %351 = vmatprep.subr.bf16.mxu0 0
      %352 = vmatpush2.bf16.msra.mxu0 0
      %353 = vmatprep.subr.bf16.mxu0 0
      %354 = vmatpush2.bf16.msra.mxu0 %v323
      %355 = vmatprep.subr.bf16.mxu0 0
      %356 = vmatpush2.bf16.msra.mxu0 %v294
      %357 = vmatprep.mubr.bf16.mxu0 %v307
      %358 = vmatmul.mubr.bf16.gmra.mxu0 %v236
      %v359 = vpop.f32.mrf.mxu0
      %v360 = vadd.f32 %v210, %v359
      %v361 = vpop.f32.mrf.mxu0
      %v362 = vpop.f32.mrf.mxu0
      %v363 = vadd.f32 %v210, %v362
      %v364 = vpop.f32.mrf.mxu0
      %365 = vmatprep.mubr.bf16.mxu0 %v310
      %366 = vmatmul.mubr.bf16.gmra.mxu0 %v238
      %v367 = vpop.f32.mrf.mxu0
      %v368 = vadd.f32 %v210, %v367
      %v369 = vpop.f32.mrf.mxu0
      %v370 = vpop.f32.mrf.mxu0
      %v371 = vadd.f32 %v210, %v370
      %v372 = vpop.f32.mrf.mxu0
      %373 = vmatprep.mubr.bf16.mxu0 %v313
      %374 = vmatmul.mubr.bf16.gmra.mxu0 %v240
      %v375 = vpop.f32.mrf.mxu0
      %v376 = vadd.f32 %v210, %v375
      %v377 = vpop.f32.mrf.mxu0
      %v378 = vpop.f32.mrf.mxu0
      %v379 = vadd.f32 %v210, %v378
      %v380 = vpop.f32.mrf.mxu0
      %381 = vmatprep.mubr.bf16.mxu0 %v316
      %382 = vmatmul.mubr.bf16.gmra.mxu0 %v242
      %v383 = vpop.f32.mrf.mxu0
      %v384 = vadd.f32 %v210, %v383
      %v385 = vpop.f32.mrf.mxu0
      %v386 = vpop.f32.mrf.mxu0
      %v387 = vadd.f32 %v210, %v386
      %v388 = vpop.f32.mrf.mxu0
      %389 = vdwg.mxu0
      %v390 = vmul.f32 %v360, 0.5
      %v391 = vmul.f32 %v363, 0.5
      %v392 = vmul.f32 %v368, 0.5
      %v393 = vmul.f32 %v371, 0.5
      %v394 = vmul.f32 %v376, 0.5
      %v395 = vmul.f32 %v379, 0.5
      %v396 = vmul.f32 %v384, 0.5
      %v397 = vmul.f32 %v387, 0.5
      %v398 = vmul.f32 %v360, 0.70710677
      %v399 = vmul.f32 %v363, 0.70710677
      %v400 = vmul.f32 %v368, 0.70710677
      %v401 = vmul.f32 %v371, 0.70710677
      %v402 = vmul.f32 %v376, 0.70710677
      %v403 = vmul.f32 %v379, 0.70710677
      %v404 = vmul.f32 %v384, 0.70710677
      %v405 = vmul.f32 %v387, 0.70710677
      %v406 = vand.u32 2147483647, %v398
      %v407 = vand.u32 2147483647, %v399
      %v408 = vand.u32 2147483647, %v400
      %v409 = vand.u32 2147483647, %v401
      %v410 = vand.u32 2147483647, %v402
      %v411 = vand.u32 2147483647, %v403
      %v412 = vand.u32 2147483647, %v404
      %v413 = vand.u32 2147483647, %v405
      %v414 = vmul.f32 %v406, 0.3275911
      %v415 = vmul.f32 %v407, 0.3275911
      %v416 = vmul.f32 %v408, 0.3275911
      %v417 = vmul.f32 %v409, 0.3275911
      %v418 = vmul.f32 %v410, 0.3275911
      %v419 = vmul.f32 %v411, 0.3275911
      %v420 = vmul.f32 %v412, 0.3275911
      %v421 = vmul.f32 %v413, 0.3275911
      %v422 = vadd.f32 %v414, 1.0
      %v423 = vadd.f32 %v415, 1.0
      %v424 = vadd.f32 %v416, 1.0
      %v425 = vadd.f32 %v417, 1.0
      %v426 = vadd.f32 %v418, 1.0
      %v427 = vadd.f32 %v419, 1.0
      %v428 = vadd.f32 %v420, 1.0
      %v429 = vadd.f32 %v421, 1.0
      %v430 = vrcp.pop %v422
      %v431 = vrcp.pop %v423
      %v432 = vrcp.pop %v424
      %v433 = vrcp.pop %v425
      %v434 = vrcp.pop %v426
      %v435 = vrcp.pop %v427
      %v436 = vrcp.pop %v428
      %v437 = vrcp.pop %v429
      %v438 = vmul.f32 %v430, 1.0614054
      %v439 = vmul.f32 %v431, 1.0614054
      %v440 = vmul.f32 %v432, 1.0614054
      %v441 = vmul.f32 %v433, 1.0614054
      %v442 = vmul.f32 %v434, 1.0614054
      %v443 = vmul.f32 %v435, 1.0614054
      %v444 = vmul.f32 %v436, 1.0614054
      %v445 = vmul.f32 %v437, 1.0614054
      %v446 = vadd.f32 %v438, -1.4531521
      %v447 = vadd.f32 %v439, -1.4531521
      %v448 = vadd.f32 %v440, -1.4531521
      %v449 = vadd.f32 %v441, -1.4531521
      %v450 = vadd.f32 %v442, -1.4531521
      %v451 = vadd.f32 %v443, -1.4531521
      %v452 = vadd.f32 %v444, -1.4531521
      %v453 = vadd.f32 %v445, -1.4531521
      %v454 = vmul.f32 %v430, %v446
      %v455 = vmul.f32 %v431, %v447
      %v456 = vmul.f32 %v432, %v448
      %v457 = vmul.f32 %v433, %v449
      %v458 = vmul.f32 %v434, %v450
      %v459 = vmul.f32 %v435, %v451
      %v460 = vmul.f32 %v436, %v452
      %v461 = vmul.f32 %v437, %v453
      %v462 = vadd.f32 %v454, 1.4214138
      %v463 = vadd.f32 %v455, 1.4214138
      %v464 = vadd.f32 %v456, 1.4214138
      %v465 = vadd.f32 %v457, 1.4214138
      %v466 = vadd.f32 %v458, 1.4214138
      %v467 = vadd.f32 %v459, 1.4214138
      %v468 = vadd.f32 %v460, 1.4214138
      %v469 = vadd.f32 %v461, 1.4214138
      %v470 = vmul.f32 %v430, %v462
      %v471 = vmul.f32 %v431, %v463
      %v472 = vmul.f32 %v432, %v464
      %v473 = vmul.f32 %v433, %v465
      %v474 = vmul.f32 %v434, %v466
      %v475 = vmul.f32 %v435, %v467
      %v476 = vmul.f32 %v436, %v468
      %v477 = vmul.f32 %v437, %v469
      %v478 = vadd.f32 %v470, -0.28449672
      %v479 = vadd.f32 %v471, -0.28449672
      %v480 = vadd.f32 %v472, -0.28449672
      %v481 = vadd.f32 %v473, -0.28449672
      %v482 = vadd.f32 %v474, -0.28449672
      %v483 = vadd.f32 %v475, -0.28449672
      %v484 = vadd.f32 %v476, -0.28449672
      %v485 = vadd.f32 %v477, -0.28449672
      %v486 = vmul.f32 %v430, %v478
      %v487 = vmul.f32 %v431, %v479
      %v488 = vmul.f32 %v432, %v480
      %v489 = vmul.f32 %v433, %v481
      %v490 = vmul.f32 %v434, %v482
      %v491 = vmul.f32 %v435, %v483
      %v492 = vmul.f32 %v436, %v484
      %v493 = vmul.f32 %v437, %v485
      %v494 = vadd.f32 %v486, 0.2548296
      %v495 = vadd.f32 %v487, 0.2548296
      %v496 = vadd.f32 %v488, 0.2548296
      %v497 = vadd.f32 %v489, 0.2548296
      %v498 = vadd.f32 %v490, 0.2548296
      %v499 = vadd.f32 %v491, 0.2548296
      %v500 = vadd.f32 %v492, 0.2548296
      %v501 = vadd.f32 %v493, 0.2548296
      %v502 = vmul.f32 %v430, %v494
      %v503 = vmul.f32 %v431, %v495
      %v504 = vmul.f32 %v432, %v496
      %v505 = vmul.f32 %v433, %v497
      %v506 = vmul.f32 %v434, %v498
      %v507 = vmul.f32 %v435, %v499
      %v508 = vmul.f32 %v436, %v500
      %v509 = vmul.f32 %v437, %v501
      %v510 = vsub.f32 0.0, %v406
      %v511 = vsub.f32 0.0, %v407
      %v512 = vsub.f32 0.0, %v408
      %v513 = vsub.f32 0.0, %v409
      %v514 = vsub.f32 0.0, %v410
      %v515 = vsub.f32 0.0, %v411
      %v516 = vsub.f32 0.0, %v412
      %v517 = vsub.f32 0.0, %v413
      %v518 = vmul.f32 %v510, %v406
      %v519 = vmul.f32 %v511, %v407
      %v520 = vmul.f32 %v512, %v408
      %v521 = vmul.f32 %v513, %v409
      %v522 = vmul.f32 %v514, %v410
      %v523 = vmul.f32 %v515, %v411
      %v524 = vmul.f32 %v516, %v412
      %v525 = vmul.f32 %v517, %v413
      %v526 = vmul.f32 %v518, 1.442695
      %v527 = vpow.pop %v526
      %v528 = vmul.f32 %v519, 1.442695
      %v529 = vpow.pop %v528
      %v530 = vmul.f32 %v520, 1.442695
      %v531 = vpow.pop %v530
      %v532 = vmul.f32 %v521, 1.442695
      %v533 = vpow.pop %v532
      %v534 = vmul.f32 %v522, 1.442695
      %v535 = vpow.pop %v534
      %v536 = vmul.f32 %v523, 1.442695
      %v537 = vpow.pop %v536
      %v538 = vmul.f32 %v524, 1.442695
      %v539 = vpow.pop %v538
      %v540 = vmul.f32 %v525, 1.442695
      %v541 = vpow.pop %v540
      %v542 = vmul.f32 %v502, %v527
      %v543 = vmul.f32 %v503, %v529
      %v544 = vmul.f32 %v504, %v531
      %v545 = vmul.f32 %v505, %v533
      %v546 = vmul.f32 %v506, %v535
      %v547 = vmul.f32 %v507, %v537
      %v548 = vmul.f32 %v508, %v539
      %v549 = vmul.f32 %v509, %v541
      %v550 = vsub.f32 1.0, %v542
      %v551 = vsub.f32 1.0, %v543
      %v552 = vsub.f32 1.0, %v544
      %v553 = vsub.f32 1.0, %v545
      %v554 = vsub.f32 1.0, %v546
      %v555 = vsub.f32 1.0, %v547
      %v556 = vsub.f32 1.0, %v548
      %v557 = vsub.f32 1.0, %v549
      %vm558 = vcmp.ge.f32.partialorder %v398, 0.0
      %vm559 = vcmp.ge.f32.partialorder %v399, 0.0
      %vm560 = vcmp.ge.f32.partialorder %v400, 0.0
      %vm561 = vcmp.ge.f32.partialorder %v401, 0.0
      %vm562 = vcmp.ge.f32.partialorder %v402, 0.0
      %vm563 = vcmp.ge.f32.partialorder %v403, 0.0
      %vm564 = vcmp.ge.f32.partialorder %v404, 0.0
      %vm565 = vcmp.ge.f32.partialorder %v405, 0.0
      %v566 = vsub.f32 0.0, %v550
      %v567 = vsub.f32 0.0, %v551
      %v568 = vsub.f32 0.0, %v552
      %v569 = vsub.f32 0.0, %v553
      %v570 = vsub.f32 0.0, %v554
      %v571 = vsub.f32 0.0, %v555
      %v572 = vsub.f32 0.0, %v556
      %v573 = vsub.f32 0.0, %v557
      %v574 = vsel %vm558, %v550, %v566
      %v575 = vsel %vm559, %v551, %v567
      %v576 = vsel %vm560, %v552, %v568
      %v577 = vsel %vm561, %v553, %v569
      %v578 = vsel %vm562, %v554, %v570
      %v579 = vsel %vm563, %v555, %v571
      %v580 = vsel %vm564, %v556, %v572
      %v581 = vsel %vm565, %v557, %v573
      %v582 = vadd.f32 %v574, 1.0
      %v583 = vadd.f32 %v575, 1.0
      %v584 = vadd.f32 %v576, 1.0
      %v585 = vadd.f32 %v577, 1.0
      %v586 = vadd.f32 %v578, 1.0
      %v587 = vadd.f32 %v579, 1.0
      %v588 = vadd.f32 %v580, 1.0
      %v589 = vadd.f32 %v581, 1.0
      %v590 = vmul.f32 %v390, %v582
      %v591 = vmul.f32 %v391, %v583
      %v592 = vmul.f32 %v392, %v584
      %v593 = vmul.f32 %v393, %v585
      %v594 = vmul.f32 %v394, %v586
      %v595 = vmul.f32 %v395, %v587
      %v596 = vmul.f32 %v396, %v588
      %v597 = vmul.f32 %v397, %v589
      %600 = vrot.lane.b32.xlu0 %v592, 32
      %v601 = vpop.permute.xlu0 %600
      %602 = vrot.lane.b32.xlu0 %v593, 32
      %v603 = vpop.permute.xlu0 %602
      %608 = vrot.lane.b32.xlu0 %v594, 64
      %v609 = vpop.permute.xlu0 %608
      %610 = vrot.lane.b32.xlu0 %v595, 64
      %v611 = vpop.permute.xlu0 %610
      %616 = vrot.lane.b32.xlu0 %v596, 96
      %v617 = vpop.permute.xlu0 %616
      %618 = vrot.lane.b32.xlu0 %v597, 96
      %v619 = vpop.permute.xlu0 %618
      %vm622 = vcmask 261120
      %v623 = vsel %vm622, %v590, %v601
      %v624 = vsel %vm622, %v591, %v603
      %vm625 = vcmask 523264
      %v626 = vsel %vm625, %v623, %v609
      %v627 = vsel %vm625, %v624, %v611
      %vm628 = vcmask 785408
      %v629 = vsel %vm628, %v626, %v617
      %v630 = vsel %vm628, %v627, %v619
      %v631 = vpack.c.bf16 %v630, %v629
      %v633 = vunpack.c.l.b16 %v631
      %v634 = vunpack.c.h.b16 %v631
      %v635 = vpack.c.b16 %v633, %v633
      %v636 = vpack.c.b16 %v634, %v634
      %639 = vst [vmem:[%s175] sm:$0xf] %v635
      %640 = vst [vmem:[%s175 + $0x4] sm:$0xf] %v636
      %s641 = smul.u32 2, %s14
      %p642 = scmp.lt.s32.totalorder %s641, 3
      %s643 = scalar_select %p642, %s641, 3
      %s644 = smul.addr %s643, 4
      %s645 = scalar_lea.vmem %s3, %s644
      // Predicated region
      $region33: #{condition_net.3} parent=31 // pred_check
        %p646 = pneg %p100
      $region34: #{condition_net.3} parent=31 // pred_check_branch
        %648 = sbr.rel (%p646) target = $region36
      $region35: #{condition_net.3} parent=31 // pred_region
        %s649 = smul.u32 2, %s14
      $region36: #{condition_net.3} parent=31 // pred_fallthru
        _
    $region32: #{condition_net.3} parent=5 // pred_fallthru
      _
    %p650 = scmp.le.s32.totalorder 2, %s9
    // Predicated region
    $region37: #{condition_net.3} parent=5 // pred_check
      %p651 = pneg %p650
    $region38: #{condition_net.3} parent=5 // pred_check_branch
      %653 = sbr.rel (%p651) target = $region40
    $region39: #{condition_net.3} parent=5 // pred_region
      %s654 = ssub.s32 %s9, 2
      // Predicated region
      $region41: #{condition_net.3} parent=39 // pred_check
        %p655 = pneg %p106
      $region42: #{condition_net.3} parent=39 // pred_check_branch
        %657 = sbr.rel (%p655) target = $region44
      $region43: #{condition_net.3} parent=39 // pred_region
        %s658 = smul.u32 2, %s15
        %p659 = scmp.lt.s32.totalorder %s658, 3
        %s660 = scalar_select %p659, %s658, 3
        %s661 = smul.addr %s660, 4
        %s662 = scalar_lea.vmem %s3, %s661
      $region44: #{condition_net.3} parent=39 // pred_fallthru
        _
    $region40: #{condition_net.3} parent=5 // pred_fallthru
      _
  $region6: #{condition_net.3} parent=0 // loop_footer
    %s13 = sadd.s32 1, %s9
  $region7: #{condition_net.3} parent=0 // loop_footer_branch
    %8 = sbr.rel target = $region3
  $region8: #{condition_net.3} parent=0 // loop_exit
    _

// kernel: condition_net.4
$region0: #{condition_net.4}
  #allocation0 [shape = 'u32[]', space=smem, size = 0x4, offset = 0x4, fixed_abs, tag = 'smem constant byte address 0x4 - core index']
  #allocation1 [shape = 'u32[144,128]{1,0:T(1,128)}', space=vmem, size = 0x12000, scoped, tag = 'internal scratch']
  %s0 = inlined_call_operand.vmem [shape: bf16[64,288], index: 0, kind: input, shape index: {}]
  %s1 = inlined_call_operand.vmem [shape: bf16[288,32], index: 1, kind: input, shape index: {}]
  %s2 = inlined_call_operand.vmem [shape: f32[1,32], index: 2, kind: input, shape index: {}]
  %s3 = inlined_call_operand.vmem [shape: bf16[16,128], index: 3, kind: output, shape index: {}]
  %s4 = sld [smem:[#allocation0]]
  $region22: #{condition_net.4} parent=0
    _
  %s6 = ssub.s32 1, %s4
  %s7 = scalar_select 0, %s6, %s4
  // Predicated region
  $region2: #{condition_net.4} parent=0 // pred_check
    _
  $region3: #{condition_net.4} parent=0 // pred_check_branch
    %9 = sbr.rel (0) target = $region5
  $region4: #{condition_net.4} parent=0 // pred_region
    _
  $region5: #{condition_net.4} parent=0 // pred_fallthru
    _
  // Predicated region
  $region6: #{condition_net.4} parent=0 // pred_check
    _
  $region7: #{condition_net.4} parent=0 // pred_check_branch
    %11 = sbr.rel (0) target = $region9
  $region8: #{condition_net.4} parent=0 // pred_region
    _
  $region9: #{condition_net.4} parent=0 // pred_fallthru
    _
  // Predicated region
  $region10: #{condition_net.4} parent=0 // pred_check
    _
  $region11: #{condition_net.4} parent=0 // pred_check_branch
    %13 = sbr.rel (0) target = $region13
  $region12: #{condition_net.4} parent=0 // pred_region
    _
  $region13: #{condition_net.4} parent=0 // pred_fallthru
    _
  %v15 = vld [vmem:[%s0] sm:$0xff]
  %v16 = vld [vmem:[%s0 + $0x8] sm:$0xf]
  %v17 = vld [vmem:[%s0 + $0xc] sm:$0xff]
  %v18 = vld [vmem:[%s0 + $0x14] sm:$0xf]
  %v19 = vld [vmem:[%s0 + $0x18] sm:$0xff]
  %v20 = vld [vmem:[%s0 + $0x20] sm:$0xf]
  %v21 = vld [vmem:[%s0 + $0x24] sm:$0xff]
  %v22 = vld [vmem:[%s0 + $0x2c] sm:$0xf]
  %v23 = vld [vmem:[%s0 + $0x30] sm:$0xff]
  %v24 = vld [vmem:[%s0 + $0x38] sm:$0xf]
  %v25 = vld [vmem:[%s0 + $0x3c] sm:$0xff]
  %v26 = vld [vmem:[%s0 + $0x44] sm:$0xf]
  %v27 = vld [vmem:[%s0 + $0x48] sm:$0xff]
  %v28 = vld [vmem:[%s0 + $0x50] sm:$0xf]
  %v29 = vld [vmem:[%s0 + $0x54] sm:$0xff]
  %v30 = vld [vmem:[%s0 + $0x5c] sm:$0xf]
  %v31 = vld [vmem:[%s1] sm:$0xf]
  %v32 = vld [vmem:[%s1 + $0x4] sm:$0xf]
  %v33 = vld [vmem:[%s1 + $0x8] sm:$0xf]
  %v34 = vld [vmem:[%s1 + $0xc] sm:$0xf]
  %v35 = vld [vmem:[%s1 + $0x10] sm:$0xf]
  %v36 = vld [vmem:[%s1 + $0x14] sm:$0xf]
  %v37 = vld [vmem:[%s1 + $0x18] sm:$0xf]
  %v38 = vld [vmem:[%s1 + $0x1c] sm:$0xf]
  %v39 = vld [vmem:[%s1 + $0x20] sm:$0xf]
  %v40 = vld [vmem:[%s1 + $0x24] sm:$0xf]
  %v41 = vld [vmem:[%s1 + $0x28] sm:$0xf]
  %v42 = vld [vmem:[%s1 + $0x2c] sm:$0xf]
  %v43 = vld [vmem:[%s1 + $0x30] sm:$0xf]
  %v44 = vld [vmem:[%s1 + $0x34] sm:$0xf]
  %v45 = vld [vmem:[%s1 + $0x38] sm:$0xf]
  %v46 = vld [vmem:[%s1 + $0x3c] sm:$0xf]
  %v47 = vld [vmem:[%s1 + $0x40] sm:$0xf]
  %v48 = vld [vmem:[%s1 + $0x44] sm:$0xf]
  %v49 = vld [vmem:[%s1 + $0x48] sm:$0xf]
  %v50 = vld [vmem:[%s1 + $0x4c] sm:$0xf]
  %v51 = vld [vmem:[%s1 + $0x50] sm:$0xf]
  %v52 = vld [vmem:[%s1 + $0x54] sm:$0xf]
  %v53 = vld [vmem:[%s1 + $0x58] sm:$0xf]
  %v54 = vld [vmem:[%s1 + $0x5c] sm:$0xf]
  %v55 = vld [vmem:[%s1 + $0x60] sm:$0xf]
  %v56 = vld [vmem:[%s1 + $0x64] sm:$0xf]
  %v57 = vld [vmem:[%s1 + $0x68] sm:$0xf]
  %v58 = vld [vmem:[%s1 + $0x6c] sm:$0xf]
  %v59 = vld [vmem:[%s1 + $0x70] sm:$0xf]
  %v60 = vld [vmem:[%s1 + $0x74] sm:$0xf]
  %v61 = vld [vmem:[%s1 + $0x78] sm:$0xf]
  %v62 = vld [vmem:[%s1 + $0x7c] sm:$0xf]
  %v63 = vld [vmem:[%s1 + $0x80] sm:$0xf]
  %v64 = vld [vmem:[%s1 + $0x84] sm:$0xf]
  %v65 = vld [vmem:[%s1 + $0x88] sm:$0xf]
  %v66 = vld [vmem:[%s1 + $0x8c] sm:$0xf]
  %v67 = vld [vmem:[%s2] sm:$0x1]
  %v69 = vlaneseq
  %v70 = vshrl.u32 %v69, 7
  %v71 = vsub.s32 0, %v70
  %v72 = vrot.slane %v67, %v71
  %v90 = vunpack.c.l.b16 %v15
  %v91 = vunpack.c.h.b16 %v15
  %v92 = vunpack.c.l.b16 %v16
  %v93 = vunpack.c.l.b16 %v17
  %v94 = vunpack.c.h.b16 %v17
  %v95 = vunpack.c.l.b16 %v18
  %v96 = vunpack.c.l.b16 %v19
  %v97 = vunpack.c.h.b16 %v19
  %v98 = vunpack.c.l.b16 %v20
  %v99 = vunpack.c.l.b16 %v21
  %v100 = vunpack.c.h.b16 %v21
  %v101 = vunpack.c.l.b16 %v22
  %v102 = vunpack.c.l.b16 %v23
  %v103 = vunpack.c.h.b16 %v23
  %v104 = vunpack.c.l.b16 %v24
  %v105 = vunpack.c.l.b16 %v25
  %v106 = vunpack.c.h.b16 %v25
  %v107 = vunpack.c.l.b16 %v26
  %v108 = vunpack.c.l.b16 %v27
  %v109 = vunpack.c.h.b16 %v27
  %v110 = vunpack.c.l.b16 %v28
  %v111 = vunpack.c.l.b16 %v29
  %v112 = vunpack.c.h.b16 %v29
  %v113 = vunpack.c.l.b16 %v30
  %v114 = vpack.c.b16 %v93, %v90
  %v115 = vpack.c.b16 %v94, %v91
  %v116 = vpack.c.b16 %v95, %v92
  %v117 = vpack.c.b16 %v99, %v96
  %v118 = vpack.c.b16 %v100, %v97
  %v119 = vpack.c.b16 %v101, %v98
  %v120 = vpack.c.b16 %v105, %v102
  %v121 = vpack.c.b16 %v106, %v103
  %v122 = vpack.c.b16 %v107, %v104
  %v123 = vpack.c.b16 %v111, %v108
  %v124 = vpack.c.b16 %v112, %v109
  %v125 = vpack.c.b16 %v113, %v110
  %v170 = vunpack.c.l.b16 %v31
  %v171 = vunpack.c.l.b16 %v32
  %v172 = vunpack.c.l.b16 %v33
  %v173 = vunpack.c.l.b16 %v34
  %v174 = vunpack.c.l.b16 %v35
  %v175 = vunpack.c.l.b16 %v36
  %v176 = vunpack.c.l.b16 %v37
  %v177 = vunpack.c.l.b16 %v38
  %v178 = vunpack.c.l.b16 %v39
  %v179 = vunpack.c.l.b16 %v40
  %v180 = vunpack.c.l.b16 %v41
  %v181 = vunpack.c.l.b16 %v42
  %v182 = vunpack.c.l.b16 %v43
  %v183 = vunpack.c.l.b16 %v44
  %v184 = vunpack.c.l.b16 %v45
  %v185 = vunpack.c.l.b16 %v46
  %v186 = vunpack.c.l.b16 %v47
  %v187 = vunpack.c.l.b16 %v48
  %v188 = vunpack.c.l.b16 %v49
  %v189 = vunpack.c.l.b16 %v50
  %v190 = vunpack.c.l.b16 %v51
  %v191 = vunpack.c.l.b16 %v52
  %v192 = vunpack.c.l.b16 %v53
  %v193 = vunpack.c.l.b16 %v54
  %v194 = vunpack.c.l.b16 %v55
  %v195 = vunpack.c.l.b16 %v56
  %v196 = vunpack.c.l.b16 %v57
  %v197 = vunpack.c.l.b16 %v58
  %v198 = vunpack.c.l.b16 %v59
  %v199 = vunpack.c.l.b16 %v60
  %v200 = vunpack.c.l.b16 %v61
  %v201 = vunpack.c.l.b16 %v62
  %v202 = vunpack.c.l.b16 %v63
  %v203 = vunpack.c.l.b16 %v64
  %v204 = vunpack.c.l.b16 %v65
  %v205 = vunpack.c.l.b16 %v66
  %v206 = vpack.c.b16 %v171, %v170
  %v207 = vpack.c.b16 %v173, %v172
  %v208 = vpack.c.b16 %v175, %v174
  %v209 = vpack.c.b16 %v177, %v176
  %v210 = vpack.c.b16 %v179, %v178
  %v211 = vpack.c.b16 %v181, %v180
  %v212 = vpack.c.b16 %v183, %v182
  %v213 = vpack.c.b16 %v185, %v184
  %v214 = vpack.c.b16 %v187, %v186
  %v215 = vpack.c.b16 %v189, %v188
  %v216 = vpack.c.b16 %v191, %v190
  %v217 = vpack.c.b16 %v193, %v192
  %v218 = vpack.c.b16 %v195, %v194
  %v219 = vpack.c.b16 %v197, %v196
  %v220 = vpack.c.b16 %v199, %v198
  %v221 = vpack.c.b16 %v201, %v200
  %v222 = vpack.c.b16 %v203, %v202
  %v223 = vpack.c.b16 %v205, %v204
  %vm242 = vcmask 261120
  %v244 = vsel %vm242, %v116, 0
  %v247 = vsel %vm242, %v119, 0
  %v250 = vsel %vm242, %v122, 0
  %v253 = vsel %vm242, %v125, 0
  %255 = vmatprep.subr.bf16.mxu0 0
  %256 = vmatpush1.bf16.msra.mxu0 %v213
  %257 = vmatprep.subr.bf16.mxu0 0
  %258 = vmatpush1.bf16.msra.mxu0 %v212
  %259 = vmatprep.subr.bf16.mxu0 0
  %260 = vmatpush1.bf16.msra.mxu0 %v211
  %261 = vmatprep.subr.bf16.mxu0 0
  %262 = vmatpush1.bf16.msra.mxu0 %v210
  %263 = vmatprep.subr.bf16.mxu0 0
  %264 = vmatpush1.bf16.msra.mxu0 %v209
  %265 = vmatprep.subr.bf16.mxu0 0
  %266 = vmatpush1.bf16.msra.mxu0 %v208
  %267 = vmatprep.subr.bf16.mxu0 0
  %268 = vmatpush1.bf16.msra.mxu0 %v207
  %269 = vmatprep.subr.bf16.mxu0 0
  %270 = vmatpush1.bf16.msra.mxu0 %v206
  %271 = vmatprep.subr.bf16.mxu0 0
  %272 = vmatpush2.bf16.msra.mxu0 %v221
  %273 = vmatprep.subr.bf16.mxu0 0
  %274 = vmatpush2.bf16.msra.mxu0 %v220
  %275 = vmatprep.subr.bf16.mxu0 0
  %276 = vmatpush2.bf16.msra.mxu0 %v219
  %277 = vmatprep.subr.bf16.mxu0 0
  %278 = vmatpush2.bf16.msra.mxu0 %v218
  %279 = vmatprep.subr.bf16.mxu0 0
  %280 = vmatpush2.bf16.msra.mxu0 %v217
  %281 = vmatprep.subr.bf16.mxu0 0
  %282 = vmatpush2.bf16.msra.mxu0 %v216
  %283 = vmatprep.subr.bf16.mxu0 0
  %284 = vmatpush2.bf16.msra.mxu0 %v215
  %285 = vmatprep.subr.bf16.mxu0 0
  %286 = vmatpush2.bf16.msra.mxu0 %v214
  %287 = vmatprep.mubr.bf16.mxu0 %v115
  %288 = vmatmul.mubr.bf16.gmra.mxu0 %v114
  %v289 = vpop.f32.mrf.mxu0
  %v290 = vadd.f32 %v72, %v289
  %v291 = vpop.f32.mrf.mxu0
  %v292 = vpop.f32.mrf.mxu0
  %v293 = vadd.f32 %v72, %v292
  %v294 = vpop.f32.mrf.mxu0
  %295 = vmatprep.mubr.bf16.mxu0 %v118
  %296 = vmatmul.mubr.bf16.gmra.mxu0 %v117
  %v297 = vpop.f32.mrf.mxu0
  %v298 = vadd.f32 %v72, %v297
  %v299 = vpop.f32.mrf.mxu0
  %v300 = vpop.f32.mrf.mxu0
  %v301 = vadd.f32 %v72, %v300
  %v302 = vpop.f32.mrf.mxu0
  %303 = vmatprep.mubr.bf16.mxu0 %v121
  %304 = vmatmul.mubr.bf16.gmra.mxu0 %v120
  %v305 = vpop.f32.mrf.mxu0
  %v306 = vadd.f32 %v72, %v305
  %v307 = vpop.f32.mrf.mxu0
  %v308 = vpop.f32.mrf.mxu0
  %v309 = vadd.f32 %v72, %v308
  %v310 = vpop.f32.mrf.mxu0
  %311 = vmatprep.mubr.bf16.mxu0 %v124
  %312 = vmatmul.mubr.bf16.gmra.mxu0 %v123
  %v313 = vpop.f32.mrf.mxu0
  %v314 = vadd.f32 %v72, %v313
  %v315 = vpop.f32.mrf.mxu0
  %v316 = vpop.f32.mrf.mxu0
  %v317 = vadd.f32 %v72, %v316
  %v318 = vpop.f32.mrf.mxu0
  %319 = vdwg.mxu0
  %320 = vmatprep.subr.bf16.mxu0 0
  %321 = vmatpush1.bf16.msra.mxu0 0
  %322 = vmatprep.subr.bf16.mxu0 0
  %323 = vmatpush1.bf16.msra.mxu0 0
  %324 = vmatprep.subr.bf16.mxu0 0
  %325 = vmatpush1.bf16.msra.mxu0 0
  %326 = vmatprep.subr.bf16.mxu0 0
  %327 = vmatpush1.bf16.msra.mxu0 0
  %328 = vmatprep.subr.bf16.mxu0 0
  %329 = vmatpush1.bf16.msra.mxu0 0
  %330 = vmatprep.subr.bf16.mxu0 0
  %331 = vmatpush1.bf16.msra.mxu0 0
  %332 = vmatprep.subr.bf16.mxu0 0
  %333 = vmatpush1.bf16.msra.mxu0 %v223
  %334 = vmatprep.subr.bf16.mxu0 0
  %335 = vmatpush1.bf16.msra.mxu0 %v222
  %336 = vmatprep.subr.bf16.mxu0 0
  %337 = vmatpush2.bf16.msra.mxu0 0
  %338 = vmatprep.subr.bf16.mxu0 0
  %339 = vmatpush2.bf16.msra.mxu0 0
  %340 = vmatprep.subr.bf16.mxu0 0
  %341 = vmatpush2.bf16.msra.mxu0 0
  %342 = vmatprep.subr.bf16.mxu0 0
  %343 = vmatpush2.bf16.msra.mxu0 0
  %344 = vmatprep.subr.bf16.mxu0 0
  %345 = vmatpush2.bf16.msra.mxu0 0
  %346 = vmatprep.subr.bf16.mxu0 0
  %347 = vmatpush2.bf16.msra.mxu0 0
  %348 = vmatprep.subr.bf16.mxu0 0
  %349 = vmatpush2.bf16.msra.mxu0 0
  %350 = vmatprep.subr.bf16.mxu0 0
  %351 = vmatpush2.bf16.msra.mxu0 0
  %352 = vmatprep.mubr.bf16.mxu0 0
  %353 = vmatmul.mubr.bf16.gmra.mxu0 %v244
  %v354 = vpop.f32.mrf.mxu0
  %v355 = vadd.f32 %v290, %v354
  %v356 = vpop.f32.mrf.mxu0
  %v357 = vpop.f32.mrf.mxu0
  %v358 = vadd.f32 %v293, %v357
  %v359 = vpop.f32.mrf.mxu0
  %360 = vmatprep.mubr.bf16.mxu0 0
  %361 = vmatmul.mubr.bf16.gmra.mxu0 %v247
  %v362 = vpop.f32.mrf.mxu0
  %v363 = vadd.f32 %v298, %v362
  %v364 = vpop.f32.mrf.mxu0
  %v365 = vpop.f32.mrf.mxu0
  %v366 = vadd.f32 %v301, %v365
  %v367 = vpop.f32.mrf.mxu0
  %368 = vmatprep.mubr.bf16.mxu0 0
  %369 = vmatmul.mubr.bf16.gmra.mxu0 %v250
  %v370 = vpop.f32.mrf.mxu0
  %v371 = vadd.f32 %v306, %v370
  %v372 = vpop.f32.mrf.mxu0
  %v373 = vpop.f32.mrf.mxu0
  %v374 = vadd.f32 %v309, %v373
  %v375 = vpop.f32.mrf.mxu0
  %376 = vmatprep.mubr.bf16.mxu0 0
  %377 = vmatmul.mubr.bf16.gmra.mxu0 %v253
  %v378 = vpop.f32.mrf.mxu0
  %v379 = vadd.f32 %v314, %v378
  %v380 = vpop.f32.mrf.mxu0
  %v381 = vpop.f32.mrf.mxu0
  %v382 = vadd.f32 %v317, %v381
  %v383 = vpop.f32.mrf.mxu0
  %384 = vdwg.mxu0
  %v385 = vmul.f32 %v355, 0.5
  %v386 = vmul.f32 %v358, 0.5
  %v387 = vmul.f32 %v363, 0.5
  %v388 = vmul.f32 %v366, 0.5
  %v389 = vmul.f32 %v371, 0.5
  %v390 = vmul.f32 %v374, 0.5
  %v391 = vmul.f32 %v379, 0.5
  %v392 = vmul.f32 %v382, 0.5
  %v393 = vmul.f32 %v355, 0.70710677
  %v394 = vmul.f32 %v358, 0.70710677
  %v395 = vmul.f32 %v363, 0.70710677
  %v396 = vmul.f32 %v366, 0.70710677
  %v397 = vmul.f32 %v371, 0.70710677
  %v398 = vmul.f32 %v374, 0.70710677
  %v399 = vmul.f32 %v379, 0.70710677
  %v400 = vmul.f32 %v382, 0.70710677
  %v401 = vand.u32 2147483647, %v393
  %v402 = vand.u32 2147483647, %v394
  %v403 = vand.u32 2147483647, %v395
  %v404 = vand.u32 2147483647, %v396
  %v405 = vand.u32 2147483647, %v397
  %v406 = vand.u32 2147483647, %v398
  %v407 = vand.u32 2147483647, %v399
  %v408 = vand.u32 2147483647, %v400
  %v409 = vmul.f32 %v401, 0.3275911
  %v410 = vmul.f32 %v402, 0.3275911
  %v411 = vmul.f32 %v403, 0.3275911
  %v412 = vmul.f32 %v404, 0.3275911
  %v413 = vmul.f32 %v405, 0.3275911
  %v414 = vmul.f32 %v406, 0.3275911
  %v415 = vmul.f32 %v407, 0.3275911
  %v416 = vmul.f32 %v408, 0.3275911
  %v417 = vadd.f32 %v409, 1.0
  %v418 = vadd.f32 %v410, 1.0
  %v419 = vadd.f32 %v411, 1.0
  %v420 = vadd.f32 %v412, 1.0
  %v421 = vadd.f32 %v413, 1.0
  %v422 = vadd.f32 %v414, 1.0
  %v423 = vadd.f32 %v415, 1.0
  %v424 = vadd.f32 %v416, 1.0
  %v425 = vrcp.pop %v417
  %v426 = vrcp.pop %v418
  %v427 = vrcp.pop %v419
  %v428 = vrcp.pop %v420
  %v429 = vrcp.pop %v421
  %v430 = vrcp.pop %v422
  %v431 = vrcp.pop %v423
  %v432 = vrcp.pop %v424
  %v433 = vmul.f32 %v425, 1.0614054
  %v434 = vmul.f32 %v426, 1.0614054
  %v435 = vmul.f32 %v427, 1.0614054
  %v436 = vmul.f32 %v428, 1.0614054
  %v437 = vmul.f32 %v429, 1.0614054
  %v438 = vmul.f32 %v430, 1.0614054
  %v439 = vmul.f32 %v431, 1.0614054
  %v440 = vmul.f32 %v432, 1.0614054
  %v441 = vadd.f32 %v433, -1.4531521
  %v442 = vadd.f32 %v434, -1.4531521
  %v443 = vadd.f32 %v435, -1.4531521
  %v444 = vadd.f32 %v436, -1.4531521
  %v445 = vadd.f32 %v437, -1.4531521
  %v446 = vadd.f32 %v438, -1.4531521
  %v447 = vadd.f32 %v439, -1.4531521
  %v448 = vadd.f32 %v440, -1.4531521
  %v449 = vmul.f32 %v425, %v441
  %v450 = vmul.f32 %v426, %v442
  %v451 = vmul.f32 %v427, %v443
  %v452 = vmul.f32 %v428, %v444
  %v453 = vmul.f32 %v429, %v445
  %v454 = vmul.f32 %v430, %v446
  %v455 = vmul.f32 %v431, %v447
  %v456 = vmul.f32 %v432, %v448
  %v457 = vadd.f32 %v449, 1.4214138
  %v458 = vadd.f32 %v450, 1.4214138
  %v459 = vadd.f32 %v451, 1.4214138
  %v460 = vadd.f32 %v452, 1.4214138
  %v461 = vadd.f32 %v453, 1.4214138
  %v462 = vadd.f32 %v454, 1.4214138
  %v463 = vadd.f32 %v455, 1.4214138
  %v464 = vadd.f32 %v456, 1.4214138
  %v465 = vmul.f32 %v425, %v457
  %v466 = vmul.f32 %v426, %v458
  %v467 = vmul.f32 %v427, %v459
  %v468 = vmul.f32 %v428, %v460
  %v469 = vmul.f32 %v429, %v461
  %v470 = vmul.f32 %v430, %v462
  %v471 = vmul.f32 %v431, %v463
  %v472 = vmul.f32 %v432, %v464
  %v473 = vadd.f32 %v465, -0.28449672
  %v474 = vadd.f32 %v466, -0.28449672
  %v475 = vadd.f32 %v467, -0.28449672
  %v476 = vadd.f32 %v468, -0.28449672
  %v477 = vadd.f32 %v469, -0.28449672
  %v478 = vadd.f32 %v470, -0.28449672
  %v479 = vadd.f32 %v471, -0.28449672
  %v480 = vadd.f32 %v472, -0.28449672
  %v481 = vmul.f32 %v425, %v473
  %v482 = vmul.f32 %v426, %v474
  %v483 = vmul.f32 %v427, %v475
  %v484 = vmul.f32 %v428, %v476
  %v485 = vmul.f32 %v429, %v477
  %v486 = vmul.f32 %v430, %v478
  %v487 = vmul.f32 %v431, %v479
  %v488 = vmul.f32 %v432, %v480
  %v489 = vadd.f32 %v481, 0.2548296
  %v490 = vadd.f32 %v482, 0.2548296
  %v491 = vadd.f32 %v483, 0.2548296
  %v492 = vadd.f32 %v484, 0.2548296
  %v493 = vadd.f32 %v485, 0.2548296
  %v494 = vadd.f32 %v486, 0.2548296
  %v495 = vadd.f32 %v487, 0.2548296
  %v496 = vadd.f32 %v488, 0.2548296
  %v497 = vmul.f32 %v425, %v489
  %v498 = vmul.f32 %v426, %v490
  %v499 = vmul.f32 %v427, %v491
  %v500 = vmul.f32 %v428, %v492
  %v501 = vmul.f32 %v429, %v493
  %v502 = vmul.f32 %v430, %v494
  %v503 = vmul.f32 %v431, %v495
  %v504 = vmul.f32 %v432, %v496
  %v505 = vsub.f32 0.0, %v401
  %v506 = vsub.f32 0.0, %v402
  %v507 = vsub.f32 0.0, %v403
  %v508 = vsub.f32 0.0, %v404
  %v509 = vsub.f32 0.0, %v405
  %v510 = vsub.f32 0.0, %v406
  %v511 = vsub.f32 0.0, %v407
  %v512 = vsub.f32 0.0, %v408
  %v513 = vmul.f32 %v505, %v401
  %v514 = vmul.f32 %v506, %v402
  %v515 = vmul.f32 %v507, %v403
  %v516 = vmul.f32 %v508, %v404
  %v517 = vmul.f32 %v509, %v405
  %v518 = vmul.f32 %v510, %v406
  %v519 = vmul.f32 %v511, %v407
  %v520 = vmul.f32 %v512, %v408
  %v521 = vmul.f32 %v513, 1.442695
  %v522 = vpow.pop %v521
  %v523 = vmul.f32 %v514, 1.442695
  %v524 = vpow.pop %v523
  %v525 = vmul.f32 %v515, 1.442695
  %v526 = vpow.pop %v525
  %v527 = vmul.f32 %v516, 1.442695
  %v528 = vpow.pop %v527
  %v529 = vmul.f32 %v517, 1.442695
  %v530 = vpow.pop %v529
  %v531 = vmul.f32 %v518, 1.442695
  %v532 = vpow.pop %v531
  %v533 = vmul.f32 %v519, 1.442695
  %v534 = vpow.pop %v533
  %v535 = vmul.f32 %v520, 1.442695
  %v536 = vpow.pop %v535
  %v537 = vmul.f32 %v497, %v522
  %v538 = vmul.f32 %v498, %v524
  %v539 = vmul.f32 %v499, %v526
  %v540 = vmul.f32 %v500, %v528
  %v541 = vmul.f32 %v501, %v530
  %v542 = vmul.f32 %v502, %v532
  %v543 = vmul.f32 %v503, %v534
  %v544 = vmul.f32 %v504, %v536
  %v545 = vsub.f32 1.0, %v537
  %v546 = vsub.f32 1.0, %v538
  %v547 = vsub.f32 1.0, %v539
  %v548 = vsub.f32 1.0, %v540
  %v549 = vsub.f32 1.0, %v541
  %v550 = vsub.f32 1.0, %v542
  %v551 = vsub.f32 1.0, %v543
  %v552 = vsub.f32 1.0, %v544
  %vm553 = vcmp.ge.f32.partialorder %v393, 0.0
  %vm554 = vcmp.ge.f32.partialorder %v394, 0.0
  %vm555 = vcmp.ge.f32.partialorder %v395, 0.0
  %vm556 = vcmp.ge.f32.partialorder %v396, 0.0
  %vm557 = vcmp.ge.f32.partialorder %v397, 0.0
  %vm558 = vcmp.ge.f32.partialorder %v398, 0.0
  %vm559 = vcmp.ge.f32.partialorder %v399, 0.0
  %vm560 = vcmp.ge.f32.partialorder %v400, 0.0
  %v561 = vsub.f32 0.0, %v545
  %v562 = vsub.f32 0.0, %v546
  %v563 = vsub.f32 0.0, %v547
  %v564 = vsub.f32 0.0, %v548
  %v565 = vsub.f32 0.0, %v549
  %v566 = vsub.f32 0.0, %v550
  %v567 = vsub.f32 0.0, %v551
  %v568 = vsub.f32 0.0, %v552
  %v569 = vsel %vm553, %v545, %v561
  %v570 = vsel %vm554, %v546, %v562
  %v571 = vsel %vm555, %v547, %v563
  %v572 = vsel %vm556, %v548, %v564
  %v573 = vsel %vm557, %v549, %v565
  %v574 = vsel %vm558, %v550, %v566
  %v575 = vsel %vm559, %v551, %v567
  %v576 = vsel %vm560, %v552, %v568
  %v577 = vadd.f32 %v569, 1.0
  %v578 = vadd.f32 %v570, 1.0
  %v579 = vadd.f32 %v571, 1.0
  %v580 = vadd.f32 %v572, 1.0
  %v581 = vadd.f32 %v573, 1.0
  %v582 = vadd.f32 %v574, 1.0
  %v583 = vadd.f32 %v575, 1.0
  %v584 = vadd.f32 %v576, 1.0
  %v585 = vmul.f32 %v385, %v577
  %v586 = vmul.f32 %v386, %v578
  %v587 = vmul.f32 %v387, %v579
  %v588 = vmul.f32 %v388, %v580
  %v589 = vmul.f32 %v389, %v581
  %v590 = vmul.f32 %v390, %v582
  %v591 = vmul.f32 %v391, %v583
  %v592 = vmul.f32 %v392, %v584
  %595 = vrot.lane.b32.xlu0 %v587, 32
  %v596 = vpop.permute.xlu0 %595
  %597 = vrot.lane.b32.xlu0 %v588, 32
  %v598 = vpop.permute.xlu0 %597
  %603 = vrot.lane.b32.xlu0 %v589, 64
  %v604 = vpop.permute.xlu0 %603
  %605 = vrot.lane.b32.xlu0 %v590, 64
  %v606 = vpop.permute.xlu0 %605
  %611 = vrot.lane.b32.xlu0 %v591, 96
  %v612 = vpop.permute.xlu0 %611
  %613 = vrot.lane.b32.xlu0 %v592, 96
  %v614 = vpop.permute.xlu0 %613
  %v617 = vsel %vm242, %v585, %v596
  %v618 = vsel %vm242, %v586, %v598
  %vm619 = vcmask 523264
  %v620 = vsel %vm619, %v617, %v604
  %v621 = vsel %vm619, %v618, %v606
  %vm622 = vcmask 785408
  %v623 = vsel %vm622, %v620, %v612
  %v624 = vsel %vm622, %v621, %v614
  %v625 = vpack.c.bf16 %v624, %v623
  %v627 = vunpack.c.l.b16 %v625
  %v628 = vunpack.c.h.b16 %v625
  %v629 = vpack.c.b16 %v627, %v627
  %v630 = vpack.c.b16 %v628, %v628
  %633 = vst [vmem:[%s3] sm:$0xf] %v629
  %634 = vst [vmem:[%s3 + $0x4] sm:$0xf] %v630
  // Predicated region
  $region14: #{condition_net.4} parent=0 // pred_check
    _
  $region15: #{condition_net.4} parent=0 // pred_check_branch
    %636 = sbr.rel (0) target = $region17
  $region16: #{condition_net.4} parent=0 // pred_region
    _
  $region17: #{condition_net.4} parent=0 // pred_fallthru
    _
  // Predicated region
  $region18: #{condition_net.4} parent=0 // pred_check
    _
  $region19: #{condition_net.4} parent=0 // pred_check_branch
    %638 = sbr.rel (0) target = $region21
  $region20: #{condition_net.4} parent=0 // pred_region
    _
  $region21: #{condition_net.4} parent=0 // pred_fallthru
    _

// kernel: condition_net.5
$region0: #{condition_net.5}
  #allocation0 [shape = 'u32[]', space=smem, size = 0x4, offset = 0x4, fixed_abs, tag = 'smem constant byte address 0x4 - core index']
  #allocation1 [shape = 'u32[144,128]{1,0:T(1,128)}', space=vmem, size = 0x12000, scoped, tag = 'internal scratch']
  %s0 = inlined_call_operand.vmem [shape: bf16[2,4,288], index: 0, kind: input, shape index: {}]
  %s1 = inlined_call_operand.vmem [shape: bf16[288,32], index: 1, kind: input, shape index: {}]
  %s2 = inlined_call_operand.vmem [shape: f32[1,32], index: 2, kind: input, shape index: {}]
  %s3 = inlined_call_operand.hbm [shape: f32[2,1,32], index: 3, kind: output, shape index: {}]
  %s4 = sld [smem:[#allocation0]]
  $region45: #{condition_net.5} parent=0
    _
  %s6 = ssub.s32 1, %s4
  %s7 = scalar_select 0, %s6, %s4
  $region1: #{condition_net.5} parent=0
    #allocation2 [shape = 'u8[1024]{0}', space=vmem, size = 0x400, scoped, tag = 'output window, operand 0']
    #allocation3 [shape = 's32[2]{0}', space=sflag, size = 0x8, scoped, tag = 'scoped memory for condition_net.5']
    %8 = vsyncpa [#allocation3], 0
    %s9 = scalar_lea.sflag [#allocation3], 1
    %10 = vsyncpa %s9, 0
    loop: start=0, step=1, limit=4
    $region2: #{condition_net.5} parent=1 // loop_pre_header
      _
    $region3: #{condition_net.5} parent=1 // loop_header
      %s12 = sphi 0, %s16
      %p13 = scmp.ge.s32.totalorder %s12, 4
      %s22 = sphi 0, %s24
      %s25 = sphi 0, %s22
      %s26 = sphi 0, %s25
      %s42 = sphi 0, %s26
      %s46 = sphi 0, %s46
      %s48 = sphi 0, %s46
      %s49 = sphi 0, %s48
      %s63 = sphi 0, %s49
      %s67 = sphi 0, %s67
      %s69 = sphi 0, %s67
      %s70 = sphi 0, %s69
      %s84 = sphi 0, %s70
      %s90 = sphi 0, %s92
      %s93 = sphi 0, %s90
      %s94 = sphi 0, %s93
      %s110 = sphi 0, %s94
    $region4: #{condition_net.5} parent=1 // loop_header_branch
      %15 = sbr.rel (%p13) target = $region8
    $region5: #{condition_net.5} parent=1 // loop_body
      %s17 = ssub.s32 %s12, 1
      %s18 = ssub.s32 %s12, 2
      %s19 = sadd.s32 %s12, 1
      %s20 = ssub.s32 %s12, %s19
      %p21 = scmp.eq.s32.totalorder %s20, 0
      %s23 = sadd.s32 %s22, 1
      %s24 = scalar_select %p21, %s22, %s23
      %p27 = pneg %p21
      %p28 = scmp.eq.s32.totalorder %s12, 1
      %p29 = por %p27, %p28
      %p30 = scmp.ne.s32.totalorder %s22, %s25
      %p31 = scmp.eq.s32.totalorder %s12, 0
      %p32 = por %p30, %p31
      %p33 = scmp.ne.s32.totalorder %s22, %s25
      %p34 = scmp.eq.s32.totalorder %s17, 1
      %p35 = por %p33, %p34
      %p36 = scmp.ne.s32.totalorder %s25, %s26
      %p37 = scmp.eq.s32.totalorder %s17, 0
      %p38 = por %p36, %p37
      %p39 = scmp.ne.s32.totalorder %s25, %s26
      %p40 = scmp.eq.s32.totalorder %s18, 1
      %p41 = por %p39, %p40
      %p43 = scmp.ne.s32.totalorder %s26, %s42
      %p44 = scmp.eq.s32.totalorder %s18, 0
      %p45 = por %p43, %p44
      %s47 = sadd.s32 %s46, 1
      %p50 = scmp.eq.s32.totalorder %s12, 1
      %p51 = scmp.ne.s32.totalorder %s46, %s48
      %p52 = scmp.eq.s32.totalorder %s12, 0
      %p53 = por %p51, %p52
      %p54 = scmp.ne.s32.totalorder %s46, %s48
      %p55 = scmp.eq.s32.totalorder %s17, 1
      %p56 = por %p54, %p55
      %p57 = scmp.ne.s32.totalorder %s48, %s49
      %p58 = scmp.eq.s32.totalorder %s17, 0
      %p59 = por %p57, %p58
      %p60 = scmp.ne.s32.totalorder %s48, %s49
      %p61 = scmp.eq.s32.totalorder %s18, 1
      %p62 = por %p60, %p61
      %p64 = scmp.ne.s32.totalorder %s49, %s63
      %p65 = scmp.eq.s32.totalorder %s18, 0
      %p66 = por %p64, %p65
      %s68 = sadd.s32 %s67, 1
      %p71 = scmp.eq.s32.totalorder %s12, 1
      %p72 = scmp.ne.s32.totalorder %s67, %s69
      %p73 = scmp.eq.s32.totalorder %s12, 0
      %p74 = por %p72, %p73
      %p75 = scmp.ne.s32.totalorder %s67, %s69
      %p76 = scmp.eq.s32.totalorder %s17, 1
      %p77 = por %p75, %p76
      %p78 = scmp.ne.s32.totalorder %s69, %s70
      %p79 = scmp.eq.s32.totalorder %s17, 0
      %p80 = por %p78, %p79
      %p81 = scmp.ne.s32.totalorder %s69, %s70
      %p82 = scmp.eq.s32.totalorder %s18, 1
      %p83 = por %p81, %p82
      %p85 = scmp.ne.s32.totalorder %s70, %s84
      %p86 = scmp.eq.s32.totalorder %s18, 0
      %p87 = por %p85, %p86
      %s88 = ssub.s32 %s12, %s19
      %p89 = scmp.eq.s32.totalorder %s88, 0
      %s91 = sadd.s32 %s90, 1
      %s92 = scalar_select %p89, %s90, %s91
      %p95 = pneg %p89
      %p96 = scmp.eq.s32.totalorder %s12, 1
      %p97 = por %p95, %p96
      %p98 = scmp.ne.s32.totalorder %s90, %s93
      %p99 = scmp.eq.s32.totalorder %s12, 0
      %p100 = por %p98, %p99
      %p101 = scmp.ne.s32.totalorder %s90, %s93
      %p102 = scmp.eq.s32.totalorder %s17, 1
      %p103 = por %p101, %p102
      %p104 = scmp.ne.s32.totalorder %s93, %s94
      %p105 = scmp.eq.s32.totalorder %s17, 0
      %p106 = por %p104, %p105
      %p107 = scmp.ne.s32.totalorder %s93, %s94
      %p108 = scmp.eq.s32.totalorder %s18, 1
      %p109 = por %p107, %p108
      %p111 = scmp.ne.s32.totalorder %s94, %s110
      %p112 = scmp.eq.s32.totalorder %s18, 0
      %p113 = por %p111, %p112
      %p114 = scmp.le.s32.totalorder 1, %s12
      %p115 = scmp.lt.s32.totalorder %s12, 3
      %p116 = pnand %p114, %p115
      %p117 = pneg %p116
      // Predicated region
      $region9: #{condition_net.5} parent=5 // pred_check
        _
      $region10: #{condition_net.5} parent=5 // pred_check_branch
        %119 = sbr.rel (%p116) target = $region12
      $region11: #{condition_net.5} parent=5 // pred_region
        %s120 = ssub.s32 %s12, 1
        // Predicated region
        $region13: #{condition_net.5} parent=11 // pred_check
          %p121 = pneg %p59
        $region14: #{condition_net.5} parent=11 // pred_check_branch
          %123 = sbr.rel (%p121) target = $region16
        $region15: #{condition_net.5} parent=11 // pred_region
          _
        $region16: #{condition_net.5} parent=11 // pred_fallthru
          _
        // Predicated region
        $region17: #{condition_net.5} parent=11 // pred_check
          %p124 = pneg %p80
        $region18: #{condition_net.5} parent=11 // pred_check_branch
          %126 = sbr.rel (%p124) target = $region20
        $region19: #{condition_net.5} parent=11 // pred_region
          _
        $region20: #{condition_net.5} parent=11 // pred_fallthru
          _
      $region12: #{condition_net.5} parent=5 // pred_fallthru
        _
      %p127 = scmp.lt.s32.totalorder %s12, 2
      // Predicated region
      $region21: #{condition_net.5} parent=5 // pred_check
        %p128 = pneg %p127
      $region22: #{condition_net.5} parent=5 // pred_check_branch
        %130 = sbr.rel (%p128) target = $region24
      $region23: #{condition_net.5} parent=5 // pred_region
        // Predicated region
        $region25: #{condition_net.5} parent=23 // pred_check
          %p131 = pneg %p32
        $region26: #{condition_net.5} parent=23 // pred_check_branch
          %133 = sbr.rel (%p131) target = $region28
        $region27: #{condition_net.5} parent=23 // pred_region
          %p134 = scmp.lt.s32.totalorder %s12, 1
          %s135 = scalar_select %p134, %s12, 1
          %s136 = smul.addr %s135, 3
          %s137 = smul.addr %s136, 2
          %s138 = scalar_lea.vmem %s0, %s137
        $region28: #{condition_net.5} parent=23 // pred_fallthru
          _
      $region24: #{condition_net.5} parent=5 // pred_fallthru
        _
      %p139 = scmp.le.s32.totalorder 1, %s12
      %p140 = scmp.lt.s32.totalorder %s12, 3
      %p141 = pnand %p139, %p140
      %p142 = pneg %p141
      // Predicated region
      $region29: #{condition_net.5} parent=5 // pred_check
        _
      $region30: #{condition_net.5} parent=5 // pred_check_branch
        %144 = sbr.rel (%p141) target = $region32
      $region31: #{condition_net.5} parent=5 // pred_region
        %s145 = ssub.s32 %s12, 1
        %p146 = scmp.lt.s32.totalorder %s17, 1
        %s147 = scalar_select %p146, %s17, 1
        %s148 = smul.addr %s147, 3
        %s149 = smul.addr %s148, 2
        %s150 = scalar_lea.vmem %s0, %s149
        %p151 = pneg %p38
        %p152 = pneg %p35
        %p153 = pneg %p59
        %p154 = pneg %p56
        %p155 = pneg %p80
        %p156 = pneg %p77
        %p157 = pneg %p106
        %p158 = pneg %p103
        %s159 = sand.u32 %s93, 1
        %s160 = scalar_lea.sflag [#allocation3], %s159
        %s161 = sand.u32 %s93, 1
        %s162 = scalar_lea.vmem [#allocation2], %s161
        %p163 = scmp.lt.s32.totalorder %s17, 1
        %s164 = scalar_select %p163, %s17, 1
        %s165 = smul.addr %s164, 3
        %s166 = smul.addr %s165, 2
        %s167 = scalar_lea.vmem %s0, %s166
        %v169 = vld [vmem:[%s167] sm:$0x3f]
        %v170 = vld [vmem:[%s1] sm:$0xf]
        %v171 = vld [vmem:[%s1 + $0x4] sm:$0xf]
        %v172 = vld [vmem:[%s1 + $0x8] sm:$0xf]
        %v173 = vld [vmem:[%s1 + $0xc] sm:$0xf]
        %v174 = vld [vmem:[%s1 + $0x10] sm:$0xf]
        %v175 = vld [vmem:[%s1 + $0x14] sm:$0xf]
        %v176 = vld [vmem:[%s1 + $0x18] sm:$0xf]
        %v177 = vld [vmem:[%s1 + $0x1c] sm:$0xf]
        %v178 = vld [vmem:[%s1 + $0x20] sm:$0xf]
        %v179 = vld [vmem:[%s1 + $0x24] sm:$0xf]
        %v180 = vld [vmem:[%s1 + $0x28] sm:$0xf]
        %v181 = vld [vmem:[%s1 + $0x2c] sm:$0xf]
        %v182 = vld [vmem:[%s1 + $0x30] sm:$0xf]
        %v183 = vld [vmem:[%s1 + $0x34] sm:$0xf]
        %v184 = vld [vmem:[%s1 + $0x38] sm:$0xf]
        %v185 = vld [vmem:[%s1 + $0x3c] sm:$0xf]
        %v186 = vld [vmem:[%s1 + $0x40] sm:$0xf]
        %v187 = vld [vmem:[%s1 + $0x44] sm:$0xf]
        %v188 = vld [vmem:[%s1 + $0x48] sm:$0xf]
        %v189 = vld [vmem:[%s1 + $0x4c] sm:$0xf]
        %v190 = vld [vmem:[%s1 + $0x50] sm:$0xf]
        %v191 = vld [vmem:[%s1 + $0x54] sm:$0xf]
        %v192 = vld [vmem:[%s1 + $0x58] sm:$0xf]
        %v193 = vld [vmem:[%s1 + $0x5c] sm:$0xf]
        %v194 = vld [vmem:[%s1 + $0x60] sm:$0xf]
        %v195 = vld [vmem:[%s1 + $0x64] sm:$0xf]
        %v196 = vld [vmem:[%s1 + $0x68] sm:$0xf]
        %v197 = vld [vmem:[%s1 + $0x6c] sm:$0xf]
        %v198 = vld [vmem:[%s1 + $0x70] sm:$0xf]
        %v199 = vld [vmem:[%s1 + $0x74] sm:$0xf]
        %v200 = vld [vmem:[%s1 + $0x78] sm:$0xf]
        %v201 = vld [vmem:[%s1 + $0x7c] sm:$0xf]
        %v202 = vld [vmem:[%s1 + $0x80] sm:$0xf]
        %v203 = vld [vmem:[%s1 + $0x84] sm:$0xf]
        %v204 = vld [vmem:[%s1 + $0x88] sm:$0xf]
        %v205 = vld [vmem:[%s1 + $0x8c] sm:$0xf]
        %v206 = vld [vmem:[%s2] sm:$0x1]
        %v208 = vlaneseq
        %v209 = vshrl.u32 %v208, 7
        %v210 = vsub.s32 0, %v209
        %v211 = vrot.slane %v206, %v210
        %v214 = vcombine.high %v169, %v169
        %v216 = vunpack.c.l.s4 1983009808
        %v217 = vunpack.c.0.s8 %v216
        %v218 = vlaneseq
        %v219 = vshrl.u32 %v218, 7
        %v220 = vsub.s32 %v217, %v219
        %v221 = vrot.slane %v169, %v220
        %v223 = vunpack.c.l.s4 1983009808
        %v224 = vunpack.c.0.s8 %v223
        %v225 = vlaneseq
        %v226 = vshrl.u32 %v225, 7
        %v227 = vsub.s32 %v224, %v226
        %v228 = vrot.slane %v214, %v227
        %v229 = vcombine.high %v221, %v221
        %v268 = vunpack.c.l.b16 %v170
        %v269 = vunpack.c.l.b16 %v171
        %v270 = vunpack.c.l.b16 %v172
        %v271 = vunpack.c.l.b16 %v173
        %v272 = vunpack.c.l.b16 %v174
        %v273 = vunpack.c.l.b16 %v175
        %v274 = vunpack.c.l.b16 %v176
        %v275 = vunpack.c.l.b16 %v177
        %v276 = vunpack.c.l.b16 %v178
        %v277 = vunpack.c.l.b16 %v179
        %v278 = vunpack.c.l.b16 %v180
        %v279 = vunpack.c.l.b16 %v181
        %v280 = vunpack.c.l.b16 %v182
        %v281 = vunpack.c.l.b16 %v183
        %v282 = vunpack.c.l.b16 %v184
        %v283 = vunpack.c.l.b16 %v185
        %v284 = vunpack.c.l.b16 %v186
        %v285 = vunpack.c.l.b16 %v187
        %v286 = vunpack.c.l.b16 %v188
        %v287 = vunpack.c.l.b16 %v189
        %v288 = vunpack.c.l.b16 %v190
        %v289 = vunpack.c.l.b16 %v191
        %v290 = vunpack.c.l.b16 %v192
        %v291 = vunpack.c.l.b16 %v193
        %v292 = vunpack.c.l.b16 %v194
        %v293 = vunpack.c.l.b16 %v195
        %v294 = vunpack.c.l.b16 %v196
        %v295 = vunpack.c.l.b16 %v197
        %v296 = vunpack.c.l.b16 %v198
        %v297 = vunpack.c.l.b16 %v199
        %v298 = vunpack.c.l.b16 %v200
        %v299 = vunpack.c.l.b16 %v201
        %v300 = vunpack.c.l.b16 %v202
        %v301 = vunpack.c.l.b16 %v203
        %v302 = vunpack.c.l.b16 %v204
        %v303 = vunpack.c.l.b16 %v205
        %v304 = vpack.c.b16 %v269, %v268
        %v305 = vpack.c.b16 %v271, %v270
        %v306 = vpack.c.b16 %v273, %v272
        %v307 = vpack.c.b16 %v275, %v274
        %v308 = vpack.c.b16 %v277, %v276
        %v309 = vpack.c.b16 %v279, %v278
        %v310 = vpack.c.b16 %v281, %v280
        %v311 = vpack.c.b16 %v283, %v282
        %v312 = vpack.c.b16 %v285, %v284
        %v313 = vpack.c.b16 %v287, %v286
        %v314 = vpack.c.b16 %v289, %v288
        %v315 = vpack.c.b16 %v291, %v290
        %v316 = vpack.c.b16 %v293, %v292
        %v317 = vpack.c.b16 %v295, %v294
        %v318 = vpack.c.b16 %v297, %v296
        %v319 = vpack.c.b16 %v299, %v298
        %v320 = vpack.c.b16 %v301, %v300
        %v321 = vpack.c.b16 %v303, %v302
        %vm340 = vcmask 261120
        %v342 = vsel %vm340, %v228, 0
        %344 = vmatprep.subr.bf16.mxu0 0
        %345 = vmatpush1.bf16.msra.mxu0 %v311
        %346 = vmatprep.subr.bf16.mxu0 0
        %347 = vmatpush1.bf16.msra.mxu0 %v310
        %348 = vmatprep.subr.bf16.mxu0 0
        %349 = vmatpush1.bf16.msra.mxu0 %v309
        %350 = vmatprep.subr.bf16.mxu0 0
        %351 = vmatpush1.bf16.msra.mxu0 %v308
        %352 = vmatprep.subr.bf16.mxu0 0
        %353 = vmatpush1.bf16.msra.mxu0 %v307
        %354 = vmatprep.subr.bf16.mxu0 0
        %355 = vmatpush1.bf16.msra.mxu0 %v306
        %356 = vmatprep.subr.bf16.mxu0 0
        %357 = vmatpush1.bf16.msra.mxu0 %v305
        %358 = vmatprep.subr.bf16.mxu0 0
        %359 = vmatpush1.bf16.msra.mxu0 %v304
        %360 = vmatprep.subr.bf16.mxu0 0
        %361 = vmatpush2.bf16.msra.mxu0 %v319
        %362 = vmatprep.subr.bf16.mxu0 0
        %363 = vmatpush2.bf16.msra.mxu0 %v318
        %364 = vmatprep.subr.bf16.mxu0 0
        %365 = vmatpush2.bf16.msra.mxu0 %v317
        %366 = vmatprep.subr.bf16.mxu0 0
        %367 = vmatpush2.bf16.msra.mxu0 %v316
        %368 = vmatprep.subr.bf16.mxu0 0
        %369 = vmatpush2.bf16.msra.mxu0 %v315
        %370 = vmatprep.subr.bf16.mxu0 0
        %371 = vmatpush2.bf16.msra.mxu0 %v314
        %372 = vmatprep.subr.bf16.mxu0 0
        %373 = vmatpush2.bf16.msra.mxu0 %v313
        %374 = vmatprep.subr.bf16.mxu0 0
        %375 = vmatpush2.bf16.msra.mxu0 %v312
        %376 = vmatprep.mubr.bf16.mxu0 %v229
        %377 = vmatmul.mubr.bf16.gmra.mxu0 %v221
        %v378 = vpop.f32.mrf.mxu0
        %v379 = vadd.f32 %v211, %v378
        %v380 = vpop.f32.mrf.mxu0
        %v381 = vpop.f32.mrf.mxu0
        %v382 = vpop.f32.mrf.mxu0
        %383 = vdwg.mxu0
        %384 = vmatprep.subr.bf16.mxu0 0
        %385 = vmatpush1.bf16.msra.mxu0 0
        %386 = vmatprep.subr.bf16.mxu0 0
        %387 = vmatpush1.bf16.msra.mxu0 0
        %388 = vmatprep.subr.bf16.mxu0 0
        %389 = vmatpush1.bf16.msra.mxu0 0
        %390 = vmatprep.subr.bf16.mxu0 0
        %391 = vmatpush1.bf16.msra.mxu0 0
        %392 = vmatprep.subr.bf16.mxu0 0
        %393 = vmatpush1.bf16.msra.mxu0 0
        %394 = vmatprep.subr.bf16.mxu0 0
        %395 = vmatpush1.bf16.msra.mxu0 0
        %396 = vmatprep.subr.bf16.mxu0 0
        %397 = vmatpush1.bf16.msra.mxu0 %v321
        %398 = vmatprep.subr.bf16.mxu0 0
        %399 = vmatpush1.bf16.msra.mxu0 %v320
        %400 = vmatprep.subr.bf16.mxu0 0
        %401 = vmatpush2.bf16.msra.mxu0 0
        %402 = vmatprep.subr.bf16.mxu0 0
        %403 = vmatpush2.bf16.msra.mxu0 0
        %404 = vmatprep.subr.bf16.mxu0 0
        %405 = vmatpush2.bf16.msra.mxu0 0
        %406 = vmatprep.subr.bf16.mxu0 0
        %407 = vmatpush2.bf16.msra.mxu0 0
        %408 = vmatprep.subr.bf16.mxu0 0
        %409 = vmatpush2.bf16.msra.mxu0 0
        %410 = vmatprep.subr.bf16.mxu0 0
        %411 = vmatpush2.bf16.msra.mxu0 0
        %412 = vmatprep.subr.bf16.mxu0 0
        %413 = vmatpush2.bf16.msra.mxu0 0
        %414 = vmatprep.subr.bf16.mxu0 0
        %415 = vmatpush2.bf16.msra.mxu0 0
        %416 = vmatprep.mubr.bf16.mxu0 0
        %417 = vmatmul.mubr.bf16.gmra.mxu0 %v342
        %v418 = vpop.f32.mrf.mxu0
        %v419 = vadd.f32 %v379, %v418
        %v420 = vpop.f32.mrf.mxu0
        %v421 = vpop.f32.mrf.mxu0
        %v422 = vpop.f32.mrf.mxu0
        %423 = vdwg.mxu0
        %v424 = vmul.f32 %v419, 0.5
        %v425 = vmul.f32 %v419, 0.70710677
        %v426 = vand.u32 2147483647, %v425
        %v427 = vmul.f32 %v426, 0.3275911
        %v428 = vadd.f32 %v427, 1.0
        %v429 = vrcp.pop %v428
        %v430 = vmul.f32 %v429, 1.0614054
        %v431 = vadd.f32 %v430, -1.4531521
        %v432 = vmul.f32 %v429, %v431
        %v433 = vadd.f32 %v432, 1.4214138
        %v434 = vmul.f32 %v429, %v433
        %v435 = vadd.f32 %v434, -0.28449672
        %v436 = vmul.f32 %v429, %v435
        %v437 = vadd.f32 %v436, 0.2548296
        %v438 = vmul.f32 %v429, %v437
        %v439 = vsub.f32 0.0, %v426
        %v440 = vmul.f32 %v439, %v426
        %v441 = vmul.f32 %v440, 1.442695
        %v442 = vpow.pop %v441
        %v443 = vmul.f32 %v438, %v442
        %v444 = vsub.f32 1.0, %v443
        %vm445 = vcmp.ge.f32.partialorder %v425, 0.0
        %v446 = vsub.f32 0.0, %v444
        %v447 = vsel %vm445, %v444, %v446
        %v448 = vadd.f32 %v447, 1.0
        %v449 = vmul.f32 %v424, %v448
        %vm450 = vcmask 257024
        %v451 = vsel %vm450, %v449, 0.0
        %v452 = vrot.slane %v451, 4
        %v453 = vadd.f32 %v451, %v452
        %v454 = vrot.slane %v453, 2
        %v455 = vadd.f32 %v453, %v454
        %v456 = vrot.slane %v455, 1
        %v457 = vadd.f32 %v455, %v456
        %v458 = vrcp.pop 4.0
        %v459 = vmul.f32 %v457, %v458
        %vm460 = vcmask 253952
        %461 = vst.msk [vmem:[%s162] sm:$0x1] %vm460, %v459
        %s462 = sand.u32 %s93, 1
        %s463 = scalar_lea.sflag [#allocation3], %s462
        %s464 = sand.u32 %s93, 1
        %s465 = scalar_lea.vmem [#allocation2], %s464
        // Predicated region
        $region33: #{condition_net.5} parent=31 // pred_check
          %p466 = pneg %p103
        $region34: #{condition_net.5} parent=31 // pred_check_branch
          %468 = sbr.rel (%p466) target = $region36
        $region35: #{condition_net.5} parent=31 // pred_region
          %s470 = ssub.s32 16, 16
          %471 = vsyncadd %s463, %s470
          %s472 = smul.addr %s17, 16
          %s473 = scalar_lea.hbm %s3, %s472
          %s475 = sshll.u32 %s465, 4
          %s476 = int_to_ptr.vmem [resolvable:$true] %s475
          %478 = dma.vmem_to_hbm [thread:$0]  %s476, 16, %s473, %s463
        $region36: #{condition_net.5} parent=31 // pred_fallthru
          _
      $region32: #{condition_net.5} parent=5 // pred_fallthru
        _
      %p479 = scmp.le.s32.totalorder 2, %s12
      // Predicated region
      $region37: #{condition_net.5} parent=5 // pred_check
        %p480 = pneg %p479
      $region38: #{condition_net.5} parent=5 // pred_check_branch
        %482 = sbr.rel (%p480) target = $region40
      $region39: #{condition_net.5} parent=5 // pred_region
        %s483 = ssub.s32 %s12, 2
        // Predicated region
        $region41: #{condition_net.5} parent=39 // pred_check
          %p484 = pneg %p109
        $region42: #{condition_net.5} parent=39 // pred_check_branch
          %486 = sbr.rel (%p484) target = $region44
        $region43: #{condition_net.5} parent=39 // pred_region
          %s487 = sand.u32 %s94, 1
          %s488 = scalar_lea.sflag [#allocation3], %s487
          %s489 = sand.u32 %s94, 1
          %s490 = scalar_lea.vmem [#allocation2], %s489
          %491 = dma.done %s488, 16
        $region44: #{condition_net.5} parent=39 // pred_fallthru
          _
      $region40: #{condition_net.5} parent=5 // pred_fallthru
        _
    $region6: #{condition_net.5} parent=1 // loop_footer
      %s16 = sadd.s32 1, %s12
    $region7: #{condition_net.5} parent=1 // loop_footer_branch
      %11 = sbr.rel target = $region3
    $region8: #{condition_net.5} parent=1 // loop_exit
      _
    %492 = vsyncpa [#allocation3], 1
    %s493 = scalar_lea.sflag [#allocation3], 1
    %494 = vsyncpa %s493, 1

</llo_original>
